<compile_context>
chip_gen: v7x
topology: tpu7x:2x2x1
jax: 0.10.0
libtpu: 0.0.40
codegen_flags: <defaults>
</compile_context>

<pallas_src>
import functools

import jax
import jax.numpy as jnp
from jax import lax
from jax.experimental import pallas as pl
from jax.experimental.pallas import tpu as pltpu

_DOUBLE_ROUNDS = 4          # 4 x (square, square, renorm) + 1 final square = 9 squarings
                            # -> effective power-iteration exponent 2^9 via the trace ratio
_EPS = 1e-30
_TINY = 1e-30
_BF16_CARRY_MIN_K = 256     # cast matmul carries to bf16 only for large Grams


def _gram_normalized(f):
    """Smaller-side Gram of f, scaled to unit Frobenius norm.

    Returns (g_n, fro) with G = fro * g_n and ||g_n||_F = 1.
    """
    n, m = f.shape
    contract_axis = 1 if n <= m else 0                      # build the smaller Gram
    g = lax.dot_general(
        f, f,
        (((contract_axis,), (contract_axis,)), ((), ())),   # no explicit f.T copy
        preferred_element_type=jnp.float32,
    )
    # Pre-scale by max|g| so the Frobenius reduce (4th powers of f) cannot
    # overflow f32 for large-magnitude features.
    gmax = jnp.max(jnp.abs(g)) + _TINY
    g1 = g / gmax
    ss = jnp.sum(g1 * g1) + _EPS
    inv_fro = lax.rsqrt(ss)                                  # one EUP rsqrt, no sqrt
    g_n = g1 * inv_fro
    fro = gmax * ss * inv_fro                                # ||G||_F = gmax * sqrt(ss)
    return g_n, fro


def _trace_ratio_lambda(g_n, h):
    """lambda_max(g_n) from the (symmetric) near-projector h: tr(g_n h) / tr(h)."""
    k = h.shape[0]
    row = lax.broadcasted_iota(jnp.int32, (k, k), 0)
    col = lax.broadcasted_iota(jnp.int32, (k, k), 1)
    diag = (row == col).astype(jnp.float32)
    num = jnp.sum(g_n * h)              # == tr(g_n @ h) since both are symmetric
    den = jnp.sum(h * diag) + _EPS      # == tr(h)
    return num / den


def _bsp_kernel(fs_ref, ft_ref, out_ref, *, bf16_s, bf16_t, unroll):
    gs_n, fro_s = _gram_normalized(fs_ref[...])
    gt_n, fro_t = _gram_normalized(ft_ref[...])

    def sq(h, use_bf16):
        a = h.astype(jnp.bfloat16) if use_bf16 else h        # MXU operand only
        return jnp.dot(a, a, preferred_element_type=jnp.float32)

    def body(_, carry):
        hs, ht = carry
        # Two independent chains -> interleaved MXU pushes; one chain's
        # reduce/rsqrt hides under the other's matmul.
        hs = sq(hs, bf16_s)
        ht = sq(ht, bf16_t)
        hs = sq(hs, bf16_s)
        ht = sq(ht, bf16_t)
        # Frobenius renorm every 2nd squaring only: right after a renorm,
        # lambda_max >= 1/sqrt(K), so two unrescaled squarings cannot
        # underflow f32 even for K in the thousands.
        hs = hs * lax.rsqrt(jnp.sum(hs * hs) + _EPS)
        ht = ht * lax.rsqrt(jnp.sum(ht * ht) + _EPS)
        return hs, ht

    hs, ht = lax.fori_loop(0, _DOUBLE_ROUNDS, body, (gs_n, gt_n), unroll=unroll)
    # Final squaring; the trace ratio is scale-invariant, so no renorm needed.
    hs = sq(hs, bf16_s)
    ht = sq(ht, bf16_t)

    lam_s = _trace_ratio_lambda(gs_n, hs)    # eigenvalue of the normalized Gram
    lam_t = _trace_ratio_lambda(gt_n, ht)
    out_ref[0, 0] = lam_s * fro_s + lam_t * fro_t


def _padded_gram_bytes(k):
    sub = ((k + 7) // 8) * 8
    lane = ((k + 127) // 128) * 128
    return sub * lane * 4


def batch_spectral_penalization_loss(f_s, f_t, *, feed_mxu_bf16=True):
    """f_s, f_t: (N, F). Returns scalar float32 loss = sigma_max(f_s)^2 + sigma_max(f_t)^2."""
    if feed_mxu_bf16:
        # The Gram build is the only O(N*F) work; bf16 halves its HBM/VMEM bytes
        # and runs the MXU at native rate.  f32 accumulation keeps accuracy.
        f_s = f_s.astype(jnp.bfloat16)
        f_t = f_t.astype(jnp.bfloat16)
    else:
        if f_s.dtype not in (jnp.float32, jnp.bfloat16):
            f_s = f_s.astype(jnp.float32)
        if f_t.dtype not in (jnp.float32, jnp.bfloat16):
            f_t = f_t.astype(jnp.float32)

    ks = min(f_s.shape)
    kt = min(f_t.shape)
    n_squarings = 2 * _DOUBLE_ROUNDS + 1

    def _flops(shape, k):
        n, m = shape
        return 2 * n * m * k + n_squarings * 2 * k ** 3

    cost = pl.CostEstimate(
        flops=_flops(f_s.shape, ks) + _flops(f_t.shape, kt),
        transcendentals=2 * (_DOUBLE_ROUNDS + 1),
        bytes_accessed=int(f_s.size * f_s.dtype.itemsize
                           + f_t.size * f_t.dtype.itemsize + 4),
    )

    # VMEM footprint: whole-array inputs (double-buffered) + a handful of live
    # K x K f32 Grams / carries.  Only raise the scoped limit when needed.
    vmem_needed = (2 * (f_s.size * f_s.dtype.itemsize
                        + f_t.size * f_t.dtype.itemsize)
                   + 16 * (_padded_gram_bytes(ks) + _padded_gram_bytes(kt))
                   + (4 << 20))
    compiler_params = None
    if vmem_needed > (16 << 20):
        compiler_params = pltpu.CompilerParams(
            vmem_limit_bytes=int(min(vmem_needed, 64 << 20)))

    kernel = functools.partial(
        _bsp_kernel,
        bf16_s=ks >= _BF16_CARRY_MIN_K,
        bf16_t=kt >= _BF16_CARRY_MIN_K,
        # Full unroll only for small Grams (LLO interleave); large K x K f32
        # temporaries would bloat VMEM and the chain is MXU-throughput-bound there.
        unroll=True if max(ks, kt) < _BF16_CARRY_MIN_K else 2,
    )

    # TODO(synk): for very large N*F, tile the contraction axis with a grid and a VMEM
    # Gram accumulator (pl.when init/finalize) so inputs never need whole-array VMEM
    # residency (matters first on v7x 64 MiB physical / v5e 16 MiB scoped).
    # TODO(synk): on v7x the two independent chains could be split across the two
    # TensorCores (size-2 "parallel" grid over stacked [f_s, f_t]); kept fused here
    # because v5e/v6e have one TensorCore and benefit from the cross-chain interleave.
    out = pl.pallas_call(
        kernel,
        out_shape=jax.ShapeDtypeStruct((1, 1), jnp.float32),
        in_specs=[
            pl.BlockSpec(memory_space=pltpu.MemorySpace.VMEM),
            pl.BlockSpec(memory_space=pltpu.MemorySpace.VMEM),
        ],
        out_specs=pl.BlockSpec(memory_space=pltpu.MemorySpace.SMEM),
        cost_estimate=cost,
        compiler_params=compiler_params,
    )(f_s, f_t)
    return out[0, 0]


if __name__ == "__main__":
    key = jax.random.PRNGKey(0)
    k_s, k_t = jax.random.split(key)

    N, F = 8, 128  # (N, F) feature matrices, same convention as the PyTorch module
    f_s = jax.random.normal(k_s, (N, F), dtype=jnp.float32)
    f_t = jax.random.normal(k_t, (N, F), dtype=jnp.float32)

    loss = jax.block_until_ready(batch_spectral_penalization_loss(f_s, f_t))

    # Reference check against full SVD (plain JAX, outside the kernel).
    s_s = jnp.linalg.svd(f_s, compute_uv=False)[0]
    s_t = jnp.linalg.svd(f_t, compute_uv=False)[0]
    ref = s_s ** 2 + s_t ** 2
    # bf16 MXU feed of the Gram build -> slightly looser tolerance than pure f32.
    assert jnp.allclose(loss, ref, rtol=2e-3, atol=1e-3), (loss, ref)

    print("KERNEL_OK")
</pallas_src>

<mosaic_0001>
module attributes {stable_mosaic.version = 11 : i64} {
  func.func @_bsp_kernel(%arg0: memref<8x128xbf16, #tpu.memory_space<vmem>>, %arg1: memref<8x128xbf16, #tpu.memory_space<vmem>>, %arg2: memref<1x1xf32, #tpu.memory_space<smem>>) attributes {dimension_semantics = [], scalar_prefetch = 0 : i64, scratch_operands = 0 : i64, tpu.core_type = #tpu.core_type<tc>} {
    %c0 = arith.constant 0 : index
    %c0_0 = arith.constant 0 : index
    %0 = vector.load %arg0[%c0, %c0_0] : memref<8x128xbf16, #tpu.memory_space<vmem>>, vector<8x128xbf16>
    %cst = arith.constant dense<0.000000e+00> : vector<8x8xf32>
    %1 = tpu.matmul %0, %0, %cst {dimension_numbers = #tpu.dot_dimension_numbers<[1], [1], [0], [0], [0, 0, 1, 0], [], []>} : vector<8x128xbf16>, vector<8x128xbf16>, vector<8x8xf32> -> vector<8x8xf32>
    %2 = math.absf %1 : vector<8x8xf32>
    %3 = vector.shape_cast %2 : vector<8x8xf32> to vector<1x8x8xf32>
    %cst_1 = arith.constant dense<0xFF800000> : vector<1xf32>
    %4 = vector.multi_reduction <maximumf>, %3, %cst_1 [1, 2] : vector<1x8x8xf32> to vector<1xf32>
    %5 = vector.shape_cast %4 : vector<1xf32> to vector<1x1x1xf32>
    %6 = vector.extract %5[0, 0, 0] : f32 from vector<1x1x1xf32>
    %cst_2 = arith.constant 1.000000e-30 : f32
    %7 = arith.addf %6, %cst_2 : f32
    %8 = vector.broadcast %7 : f32 to vector<8x8xf32>
    %9 = arith.divf %1, %8 : vector<8x8xf32>
    %10 = arith.mulf %9, %9 : vector<8x8xf32>
    %11 = vector.shape_cast %10 : vector<8x8xf32> to vector<1x8x8xf32>
    %cst_3 = arith.constant dense<0.000000e+00> : vector<1xf32>
    %12 = vector.multi_reduction <add>, %11, %cst_3 [1, 2] : vector<1x8x8xf32> to vector<1xf32>
    %13 = vector.shape_cast %12 : vector<1xf32> to vector<1x1x1xf32>
    %14 = vector.extract %13[0, 0, 0] : f32 from vector<1x1x1xf32>
    %cst_4 = arith.constant 1.000000e-30 : f32
    %15 = arith.addf %14, %cst_4 : f32
    %16 = math.rsqrt %15 : f32
    %17 = vector.broadcast %16 : f32 to vector<8x8xf32>
    %18 = arith.mulf %9, %17 : vector<8x8xf32>
    %19 = arith.mulf %7, %15 : f32
    %20 = arith.mulf %19, %16 : f32
    %c0_5 = arith.constant 0 : index
    %c0_6 = arith.constant 0 : index
    %21 = vector.load %arg1[%c0_5, %c0_6] : memref<8x128xbf16, #tpu.memory_space<vmem>>, vector<8x128xbf16>
    %cst_7 = arith.constant dense<0.000000e+00> : vector<8x8xf32>
    %22 = tpu.matmul %21, %21, %cst_7 {dimension_numbers = #tpu.dot_dimension_numbers<[1], [1], [0], [0], [0, 0, 1, 0], [], []>} : vector<8x128xbf16>, vector<8x128xbf16>, vector<8x8xf32> -> vector<8x8xf32>
    %23 = math.absf %22 : vector<8x8xf32>
    %24 = vector.shape_cast %23 : vector<8x8xf32> to vector<1x8x8xf32>
    %cst_8 = arith.constant dense<0xFF800000> : vector<1xf32>
    %25 = vector.multi_reduction <maximumf>, %24, %cst_8 [1, 2] : vector<1x8x8xf32> to vector<1xf32>
    %26 = vector.shape_cast %25 : vector<1xf32> to vector<1x1x1xf32>
    %27 = vector.extract %26[0, 0, 0] : f32 from vector<1x1x1xf32>
    %cst_9 = arith.constant 1.000000e-30 : f32
    %28 = arith.addf %27, %cst_9 : f32
    %29 = vector.broadcast %28 : f32 to vector<8x8xf32>
    %30 = arith.divf %22, %29 : vector<8x8xf32>
    %31 = arith.mulf %30, %30 : vector<8x8xf32>
    %32 = vector.shape_cast %31 : vector<8x8xf32> to vector<1x8x8xf32>
    %cst_10 = arith.constant dense<0.000000e+00> : vector<1xf32>
    %33 = vector.multi_reduction <add>, %32, %cst_10 [1, 2] : vector<1x8x8xf32> to vector<1xf32>
    %34 = vector.shape_cast %33 : vector<1xf32> to vector<1x1x1xf32>
    %35 = vector.extract %34[0, 0, 0] : f32 from vector<1x1x1xf32>
    %cst_11 = arith.constant 1.000000e-30 : f32
    %36 = arith.addf %35, %cst_11 : f32
    %37 = math.rsqrt %36 : f32
    %38 = vector.broadcast %37 : f32 to vector<8x8xf32>
    %39 = arith.mulf %30, %38 : vector<8x8xf32>
    %40 = arith.mulf %28, %36 : f32
    %41 = arith.mulf %40, %37 : f32
    %c0_i32 = arith.constant 0 : i32
    %cst_12 = arith.constant dense<0.000000e+00> : vector<8x8xf32>
    %42 = tpu.matmul %18, %18, %cst_12 {dimension_numbers = #tpu.dot_dimension_numbers<[1], [0], [0], [1], [0, 0, 1, 1], [], []>} : vector<8x8xf32>, vector<8x8xf32>, vector<8x8xf32> -> vector<8x8xf32>
    %cst_13 = arith.constant dense<0.000000e+00> : vector<8x8xf32>
    %43 = tpu.matmul %39, %39, %cst_13 {dimension_numbers = #tpu.dot_dimension_numbers<[1], [0], [0], [1], [0, 0, 1, 1], [], []>} : vector<8x8xf32>, vector<8x8xf32>, vector<8x8xf32> -> vector<8x8xf32>
    %cst_14 = arith.constant dense<0.000000e+00> : vector<8x8xf32>
    %44 = tpu.matmul %42, %42, %cst_14 {dimension_numbers = #tpu.dot_dimension_numbers<[1], [0], [0], [1], [0, 0, 1, 1], [], []>} : vector<8x8xf32>, vector<8x8xf32>, vector<8x8xf32> -> vector<8x8xf32>
    %cst_15 = arith.constant dense<0.000000e+00> : vector<8x8xf32>
    %45 = tpu.matmul %43, %43, %cst_15 {dimension_numbers = #tpu.dot_dimension_numbers<[1], [0], [0], [1], [0, 0, 1, 1], [], []>} : vector<8x8xf32>, vector<8x8xf32>, vector<8x8xf32> -> vector<8x8xf32>
    %46 = arith.mulf %44, %44 : vector<8x8xf32>
    %47 = vector.shape_cast %46 : vector<8x8xf32> to vector<1x8x8xf32>
    %cst_16 = arith.constant dense<0.000000e+00> : vector<1xf32>
    %48 = vector.multi_reduction <add>, %47, %cst_16 [1, 2] : vector<1x8x8xf32> to vector<1xf32>
    %49 = vector.shape_cast %48 : vector<1xf32> to vector<1x1x1xf32>
    %50 = vector.extract %49[0, 0, 0] : f32 from vector<1x1x1xf32>
    %cst_17 = arith.constant 1.000000e-30 : f32
    %51 = arith.addf %50, %cst_17 : f32
    %52 = math.rsqrt %51 : f32
    %53 = vector.broadcast %52 : f32 to vector<8x8xf32>
    %54 = arith.mulf %44, %53 : vector<8x8xf32>
    %55 = arith.mulf %45, %45 : vector<8x8xf32>
    %56 = vector.shape_cast %55 : vector<8x8xf32> to vector<1x8x8xf32>
    %cst_18 = arith.constant dense<0.000000e+00> : vector<1xf32>
    %57 = vector.multi_reduction <add>, %56, %cst_18 [1, 2] : vector<1x8x8xf32> to vector<1xf32>
    %58 = vector.shape_cast %57 : vector<1xf32> to vector<1x1x1xf32>
    %59 = vector.extract %58[0, 0, 0] : f32 from vector<1x1x1xf32>
    %cst_19 = arith.constant 1.000000e-30 : f32
    %60 = arith.addf %59, %cst_19 : f32
    %61 = math.rsqrt %60 : f32
    %62 = vector.broadcast %61 : f32 to vector<8x8xf32>
    %63 = arith.mulf %45, %62 : vector<8x8xf32>
    %c1_i32 = arith.constant 1 : i32
    %cst_20 = arith.constant dense<0.000000e+00> : vector<8x8xf32>
    %64 = tpu.matmul %54, %54, %cst_20 {dimension_numbers = #tpu.dot_dimension_numbers<[1], [0], [0], [1], [0, 0, 1, 1], [], []>} : vector<8x8xf32>, vector<8x8xf32>, vector<8x8xf32> -> vector<8x8xf32>
    %cst_21 = arith.constant dense<0.000000e+00> : vector<8x8xf32>
    %65 = tpu.matmul %63, %63, %cst_21 {dimension_numbers = #tpu.dot_dimension_numbers<[1], [0], [0], [1], [0, 0, 1, 1], [], []>} : vector<8x8xf32>, vector<8x8xf32>, vector<8x8xf32> -> vector<8x8xf32>
    %cst_22 = arith.constant dense<0.000000e+00> : vector<8x8xf32>
    %66 = tpu.matmul %64, %64, %cst_22 {dimension_numbers = #tpu.dot_dimension_numbers<[1], [0], [0], [1], [0, 0, 1, 1], [], []>} : vector<8x8xf32>, vector<8x8xf32>, vector<8x8xf32> -> vector<8x8xf32>
    %cst_23 = arith.constant dense<0.000000e+00> : vector<8x8xf32>
    %67 = tpu.matmul %65, %65, %cst_23 {dimension_numbers = #tpu.dot_dimension_numbers<[1], [0], [0], [1], [0, 0, 1, 1], [], []>} : vector<8x8xf32>, vector<8x8xf32>, vector<8x8xf32> -> vector<8x8xf32>
    %68 = arith.mulf %66, %66 : vector<8x8xf32>
    %69 = vector.shape_cast %68 : vector<8x8xf32> to vector<1x8x8xf32>
    %cst_24 = arith.constant dense<0.000000e+00> : vector<1xf32>
    %70 = vector.multi_reduction <add>, %69, %cst_24 [1, 2] : vector<1x8x8xf32> to vector<1xf32>
    %71 = vector.shape_cast %70 : vector<1xf32> to vector<1x1x1xf32>
    %72 = vector.extract %71[0, 0, 0] : f32 from vector<1x1x1xf32>
    %cst_25 = arith.constant 1.000000e-30 : f32
    %73 = arith.addf %72, %cst_25 : f32
    %74 = math.rsqrt %73 : f32
    %75 = vector.broadcast %74 : f32 to vector<8x8xf32>
    %76 = arith.mulf %66, %75 : vector<8x8xf32>
    %77 = arith.mulf %67, %67 : vector<8x8xf32>
    %78 = vector.shape_cast %77 : vector<8x8xf32> to vector<1x8x8xf32>
    %cst_26 = arith.constant dense<0.000000e+00> : vector<1xf32>
    %79 = vector.multi_reduction <add>, %78, %cst_26 [1, 2] : vector<1x8x8xf32> to vector<1xf32>
    %80 = vector.shape_cast %79 : vector<1xf32> to vector<1x1x1xf32>
    %81 = vector.extract %80[0, 0, 0] : f32 from vector<1x1x1xf32>
    %cst_27 = arith.constant 1.000000e-30 : f32
    %82 = arith.addf %81, %cst_27 : f32
    %83 = math.rsqrt %82 : f32
    %84 = vector.broadcast %83 : f32 to vector<8x8xf32>
    %85 = arith.mulf %67, %84 : vector<8x8xf32>
    %c2_i32 = arith.constant 2 : i32
    %cst_28 = arith.constant dense<0.000000e+00> : vector<8x8xf32>
    %86 = tpu.matmul %76, %76, %cst_28 {dimension_numbers = #tpu.dot_dimension_numbers<[1], [0], [0], [1], [0, 0, 1, 1], [], []>} : vector<8x8xf32>, vector<8x8xf32>, vector<8x8xf32> -> vector<8x8xf32>
    %cst_29 = arith.constant dense<0.000000e+00> : vector<8x8xf32>
    %87 = tpu.matmul %85, %85, %cst_29 {dimension_numbers = #tpu.dot_dimension_numbers<[1], [0], [0], [1], [0, 0, 1, 1], [], []>} : vector<8x8xf32>, vector<8x8xf32>, vector<8x8xf32> -> vector<8x8xf32>
    %cst_30 = arith.constant dense<0.000000e+00> : vector<8x8xf32>
    %88 = tpu.matmul %86, %86, %cst_30 {dimension_numbers = #tpu.dot_dimension_numbers<[1], [0], [0], [1], [0, 0, 1, 1], [], []>} : vector<8x8xf32>, vector<8x8xf32>, vector<8x8xf32> -> vector<8x8xf32>
    %cst_31 = arith.constant dense<0.000000e+00> : vector<8x8xf32>
    %89 = tpu.matmul %87, %87, %cst_31 {dimension_numbers = #tpu.dot_dimension_numbers<[1], [0], [0], [1], [0, 0, 1, 1], [], []>} : vector<8x8xf32>, vector<8x8xf32>, vector<8x8xf32> -> vector<8x8xf32>
    %90 = arith.mulf %88, %88 : vector<8x8xf32>
    %91 = vector.shape_cast %90 : vector<8x8xf32> to vector<1x8x8xf32>
    %cst_32 = arith.constant dense<0.000000e+00> : vector<1xf32>
    %92 = vector.multi_reduction <add>, %91, %cst_32 [1, 2] : vector<1x8x8xf32> to vector<1xf32>
    %93 = vector.shape_cast %92 : vector<1xf32> to vector<1x1x1xf32>
    %94 = vector.extract %93[0, 0, 0] : f32 from vector<1x1x1xf32>
    %cst_33 = arith.constant 1.000000e-30 : f32
    %95 = arith.addf %94, %cst_33 : f32
    %96 = math.rsqrt %95 : f32
    %97 = vector.broadcast %96 : f32 to vector<8x8xf32>
    %98 = arith.mulf %88, %97 : vector<8x8xf32>
    %99 = arith.mulf %89, %89 : vector<8x8xf32>
    %100 = vector.shape_cast %99 : vector<8x8xf32> to vector<1x8x8xf32>
    %cst_34 = arith.constant dense<0.000000e+00> : vector<1xf32>
    %101 = vector.multi_reduction <add>, %100, %cst_34 [1, 2] : vector<1x8x8xf32> to vector<1xf32>
    %102 = vector.shape_cast %101 : vector<1xf32> to vector<1x1x1xf32>
    %103 = vector.extract %102[0, 0, 0] : f32 from vector<1x1x1xf32>
    %cst_35 = arith.constant 1.000000e-30 : f32
    %104 = arith.addf %103, %cst_35 : f32
    %105 = math.rsqrt %104 : f32
    %106 = vector.broadcast %105 : f32 to vector<8x8xf32>
    %107 = arith.mulf %89, %106 : vector<8x8xf32>
    %c3_i32 = arith.constant 3 : i32
    %cst_36 = arith.constant dense<0.000000e+00> : vector<8x8xf32>
    %108 = tpu.matmul %98, %98, %cst_36 {dimension_numbers = #tpu.dot_dimension_numbers<[1], [0], [0], [1], [0, 0, 1, 1], [], []>} : vector<8x8xf32>, vector<8x8xf32>, vector<8x8xf32> -> vector<8x8xf32>
    %cst_37 = arith.constant dense<0.000000e+00> : vector<8x8xf32>
    %109 = tpu.matmul %107, %107, %cst_37 {dimension_numbers = #tpu.dot_dimension_numbers<[1], [0], [0], [1], [0, 0, 1, 1], [], []>} : vector<8x8xf32>, vector<8x8xf32>, vector<8x8xf32> -> vector<8x8xf32>
    %cst_38 = arith.constant dense<0.000000e+00> : vector<8x8xf32>
    %110 = tpu.matmul %108, %108, %cst_38 {dimension_numbers = #tpu.dot_dimension_numbers<[1], [0], [0], [1], [0, 0, 1, 1], [], []>} : vector<8x8xf32>, vector<8x8xf32>, vector<8x8xf32> -> vector<8x8xf32>
    %cst_39 = arith.constant dense<0.000000e+00> : vector<8x8xf32>
    %111 = tpu.matmul %109, %109, %cst_39 {dimension_numbers = #tpu.dot_dimension_numbers<[1], [0], [0], [1], [0, 0, 1, 1], [], []>} : vector<8x8xf32>, vector<8x8xf32>, vector<8x8xf32> -> vector<8x8xf32>
    %112 = arith.mulf %110, %110 : vector<8x8xf32>
    %113 = vector.shape_cast %112 : vector<8x8xf32> to vector<1x8x8xf32>
    %cst_40 = arith.constant dense<0.000000e+00> : vector<1xf32>
    %114 = vector.multi_reduction <add>, %113, %cst_40 [1, 2] : vector<1x8x8xf32> to vector<1xf32>
    %115 = vector.shape_cast %114 : vector<1xf32> to vector<1x1x1xf32>
    %116 = vector.extract %115[0, 0, 0] : f32 from vector<1x1x1xf32>
    %cst_41 = arith.constant 1.000000e-30 : f32
    %117 = arith.addf %116, %cst_41 : f32
    %118 = math.rsqrt %117 : f32
    %119 = vector.broadcast %118 : f32 to vector<8x8xf32>
    %120 = arith.mulf %110, %119 : vector<8x8xf32>
    %121 = arith.mulf %111, %111 : vector<8x8xf32>
    %122 = vector.shape_cast %121 : vector<8x8xf32> to vector<1x8x8xf32>
    %cst_42 = arith.constant dense<0.000000e+00> : vector<1xf32>
    %123 = vector.multi_reduction <add>, %122, %cst_42 [1, 2] : vector<1x8x8xf32> to vector<1xf32>
    %124 = vector.shape_cast %123 : vector<1xf32> to vector<1x1x1xf32>
    %125 = vector.extract %124[0, 0, 0] : f32 from vector<1x1x1xf32>
    %cst_43 = arith.constant 1.000000e-30 : f32
    %126 = arith.addf %125, %cst_43 : f32
    %127 = math.rsqrt %126 : f32
    %128 = vector.broadcast %127 : f32 to vector<8x8xf32>
    %129 = arith.mulf %111, %128 : vector<8x8xf32>
    %cst_44 = arith.constant dense<0.000000e+00> : vector<8x8xf32>
    %130 = tpu.matmul %120, %120, %cst_44 {dimension_numbers = #tpu.dot_dimension_numbers<[1], [0], [0], [1], [0, 0, 1, 1], [], []>} : vector<8x8xf32>, vector<8x8xf32>, vector<8x8xf32> -> vector<8x8xf32>
    %cst_45 = arith.constant dense<0.000000e+00> : vector<8x8xf32>
    %131 = tpu.matmul %129, %129, %cst_45 {dimension_numbers = #tpu.dot_dimension_numbers<[1], [0], [0], [1], [0, 0, 1, 1], [], []>} : vector<8x8xf32>, vector<8x8xf32>, vector<8x8xf32> -> vector<8x8xf32>
    %132 = tpu.iota {dimensions = array<i32: 0>} : vector<8x8xi32>
    %133 = tpu.iota {dimensions = array<i32: 1>} : vector<8x8xi32>
    %134 = arith.cmpi eq, %132, %133 : vector<8x8xi32>
    %135 = arith.extui %134 : vector<8x8xi1> to vector<8x8xi32>
    %136 = arith.sitofp %135 : vector<8x8xi32> to vector<8x8xf32>
    %137 = arith.mulf %18, %130 : vector<8x8xf32>
    %138 = vector.shape_cast %137 : vector<8x8xf32> to vector<1x8x8xf32>
    %cst_46 = arith.constant dense<0.000000e+00> : vector<1xf32>
    %139 = vector.multi_reduction <add>, %138, %cst_46 [1, 2] : vector<1x8x8xf32> to vector<1xf32>
    %140 = vector.shape_cast %139 : vector<1xf32> to vector<1x1x1xf32>
    %141 = vector.extract %140[0, 0, 0] : f32 from vector<1x1x1xf32>
    %142 = arith.mulf %130, %136 : vector<8x8xf32>
    %143 = vector.shape_cast %142 : vector<8x8xf32> to vector<1x8x8xf32>
    %cst_47 = arith.constant dense<0.000000e+00> : vector<1xf32>
    %144 = vector.multi_reduction <add>, %143, %cst_47 [1, 2] : vector<1x8x8xf32> to vector<1xf32>
    %145 = vector.shape_cast %144 : vector<1xf32> to vector<1x1x1xf32>
    %146 = vector.extract %145[0, 0, 0] : f32 from vector<1x1x1xf32>
    %cst_48 = arith.constant 1.000000e-30 : f32
    %147 = arith.addf %146, %cst_48 : f32
    %148 = arith.divf %141, %147 : f32
    %149 = tpu.iota {dimensions = array<i32: 0>} : vector<8x8xi32>
    %150 = tpu.iota {dimensions = array<i32: 1>} : vector<8x8xi32>
    %151 = arith.cmpi eq, %149, %150 : vector<8x8xi32>
    %152 = arith.extui %151 : vector<8x8xi1> to vector<8x8xi32>
    %153 = arith.sitofp %152 : vector<8x8xi32> to vector<8x8xf32>
    %154 = arith.mulf %39, %131 : vector<8x8xf32>
    %155 = vector.shape_cast %154 : vector<8x8xf32> to vector<1x8x8xf32>
    %cst_49 = arith.constant dense<0.000000e+00> : vector<1xf32>
    %156 = vector.multi_reduction <add>, %155, %cst_49 [1, 2] : vector<1x8x8xf32> to vector<1xf32>
    %157 = vector.shape_cast %156 : vector<1xf32> to vector<1x1x1xf32>
    %158 = vector.extract %157[0, 0, 0] : f32 from vector<1x1x1xf32>
    %159 = arith.mulf %131, %153 : vector<8x8xf32>
    %160 = vector.shape_cast %159 : vector<8x8xf32> to vector<1x8x8xf32>
    %cst_50 = arith.constant dense<0.000000e+00> : vector<1xf32>
    %161 = vector.multi_reduction <add>, %160, %cst_50 [1, 2] : vector<1x8x8xf32> to vector<1xf32>
    %162 = vector.shape_cast %161 : vector<1xf32> to vector<1x1x1xf32>
    %163 = vector.extract %162[0, 0, 0] : f32 from vector<1x1x1xf32>
    %cst_51 = arith.constant 1.000000e-30 : f32
    %164 = arith.addf %163, %cst_51 : f32
    %165 = arith.divf %158, %164 : f32
    %166 = arith.mulf %148, %20 : f32
    %167 = arith.mulf %165, %41 : f32
    %168 = arith.addf %166, %167 : f32
    %c0_52 = arith.constant 0 : index
    %c0_53 = arith.constant 0 : index
    %169 = memref.load %arg2[%c0_52, %c0_53] : memref<1x1xf32, #tpu.memory_space<smem>>
    memref.store %168, %arg2[%c0_52, %c0_53] : memref<1x1xf32, #tpu.memory_space<smem>>
    return
  }
}

</mosaic_0001>

<llo_original>
// kernel: tpu_custom_call.1
$region0: #{tpu_custom_call.1}
  #allocation0 [shape = 'u32[]', space=smem, size = 0x4, offset = 0x4, fixed_abs, tag = 'smem constant byte address 0x4 - core index']
  #allocation1 [shape = 'u32[144,128]{1,0:T(1,128)}', space=vmem, size = 0x12000, scoped, tag = 'internal scratch']
  %s0 = inlined_call_operand.hbm [shape: bf16[8,128], index: 0, kind: input, shape index: {}]
  %s1 = inlined_call_operand.hbm [shape: bf16[8,128], index: 1, kind: input, shape index: {}]
  %s2 = inlined_call_operand.hbm [shape: f32[1,1], index: 2, kind: output, shape index: {}]
  %s3 = sld [smem:[#allocation0]]
  $region26: #{tpu_custom_call.1} parent=0
    _
  %s5 = ssub.s32 1, %s3
  %s6 = scalar_select 0, %s5, %s3
  $region1: #{tpu_custom_call.1} parent=0
    #allocation2 [shape = 'u8[2048]{0}', space=vmem, size = 0x800, scoped, tag = 'input window, operand 0, single buffered']
    #allocation3 [shape = 's32[1]{0}', space=sflag, size = 0x4, scoped, tag = 'scoped memory for tpu_custom_call.1']
    #allocation4 [shape = 's32[1]{0}', space=sflag, size = 0x4, scoped, tag = 'scoped memory for tpu_custom_call.1']
    #allocation5 [shape = 'u8[2048]{0}', space=vmem, size = 0x800, scoped, tag = 'input window, operand 1, single buffered']
    #allocation6 [shape = 's32[1]{0}', space=sflag, size = 0x4, scoped, tag = 'scoped memory for tpu_custom_call.1']
    #allocation7 [shape = 'u8[512]{0}', space=smem, size = 0x200, scoped, tag = 'output window, operand 0, single buffered']
    %7 = vsyncpa [#allocation3], 0
    %8 = vsyncpa [#allocation6], 0
    %9 = vsyncpa [#allocation4], 0
    // Predicated region
    $region2: #{tpu_custom_call.1} parent=1 // pred_check
      _
    $region3: #{tpu_custom_call.1} parent=1 // pred_check_branch
      %11 = sbr.rel (0) target = $region5
    $region4: #{tpu_custom_call.1} parent=1 // pred_region
      %s13 = ssub.s32 64, 64
      %14 = vsyncadd [#allocation3], %s13
      %s16 = sshll.u32 [#allocation2], 4
      %s17 = int_to_ptr.vmem [resolvable:$true] %s16
      %19 = dma.hbm_to_vmem [thread:$0]  %s0, 64, %s17, [#allocation3]
    $region5: #{tpu_custom_call.1} parent=1 // pred_fallthru
      _
    // Predicated region
    $region6: #{tpu_custom_call.1} parent=1 // pred_check
      _
    $region7: #{tpu_custom_call.1} parent=1 // pred_check_branch
      %21 = sbr.rel (0) target = $region9
    $region8: #{tpu_custom_call.1} parent=1 // pred_region
      %s23 = ssub.s32 64, 64
      %24 = vsyncadd [#allocation6], %s23
      %s26 = sshll.u32 [#allocation5], 4
      %s27 = int_to_ptr.vmem [resolvable:$true] %s26
      %29 = dma.hbm_to_vmem [thread:$0]  %s1, 64, %s27, [#allocation6]
    $region9: #{tpu_custom_call.1} parent=1 // pred_fallthru
      _
    // Predicated region
    $region10: #{tpu_custom_call.1} parent=1 // pred_check
      _
    $region11: #{tpu_custom_call.1} parent=1 // pred_check_branch
      %31 = sbr.rel (0) target = $region13
    $region12: #{tpu_custom_call.1} parent=1 // pred_region
      %32 = dma.done [#allocation3], 64
    $region13: #{tpu_custom_call.1} parent=1 // pred_fallthru
      _
    // Predicated region
    $region14: #{tpu_custom_call.1} parent=1 // pred_check
      _
    $region15: #{tpu_custom_call.1} parent=1 // pred_check_branch
      %34 = sbr.rel (0) target = $region17
    $region16: #{tpu_custom_call.1} parent=1 // pred_region
      %35 = dma.done [#allocation6], 64
    $region17: #{tpu_custom_call.1} parent=1 // pred_fallthru
      _
    %v37 = vld [vmem:[#allocation2] sm:$0xf]
    %38 = vmatprep.subr.bf16.mxu0 0
    %39 = vmatpush1.bf16.xpose.msra.mxu0 %v37
    %40 = vmatprep.subr.bf16.mxu0 0
    %41 = vmatpush1.bf16.xpose.msra.mxu0 0
    %42 = vmatprep.subr.bf16.mxu0 0
    %43 = vmatpush1.bf16.xpose.msra.mxu0 0
    %44 = vmatprep.subr.bf16.mxu0 0
    %45 = vmatpush1.bf16.xpose.msra.mxu0 0
    %46 = vmatprep.subr.bf16.mxu0 0
    %47 = vmatpush1.bf16.xpose.msra.mxu0 0
    %48 = vmatprep.subr.bf16.mxu0 0
    %49 = vmatpush1.bf16.xpose.msra.mxu0 0
    %50 = vmatprep.subr.bf16.mxu0 0
    %51 = vmatpush1.bf16.xpose.msra.mxu0 0
    %52 = vmatprep.subr.bf16.mxu0 0
    %53 = vmatpush1.bf16.xpose.msra.mxu0 0
    %54 = vmatprep.subr.bf16.mxu0 0
    %55 = vmatpush1.bf16.xpose.msra.mxu0 0
    %56 = vmatprep.subr.bf16.mxu0 0
    %57 = vmatpush1.bf16.xpose.msra.mxu0 0
    %58 = vmatprep.subr.bf16.mxu0 0
    %59 = vmatpush1.bf16.xpose.msra.mxu0 0
    %60 = vmatprep.subr.bf16.mxu0 0
    %61 = vmatpush1.bf16.xpose.msra.mxu0 0
    %62 = vmatprep.subr.bf16.mxu0 0
    %63 = vmatpush1.bf16.xpose.msra.mxu0 0
    %64 = vmatprep.subr.bf16.mxu0 0
    %65 = vmatpush1.bf16.xpose.msra.mxu0 0
    %66 = vmatprep.subr.bf16.mxu0 0
    %67 = vmatpush1.bf16.xpose.msra.mxu0 0
    %68 = vmatprep.subr.bf16.mxu0 0
    %69 = vmatpush1.bf16.xpose.msra.mxu0 0
    %70 = vmatprep.mubr.bf16.mxu0 0
    %71 = vmatmul.mubr.bf16.gmra.mrb[0].mxu0 %v37
    %v72 = vpop.f32.mrb[0].mxu0
    %v73 = vadd.f32 0.0, %v72
    %v74 = vpop.f32.mrb[0].mxu0
    %v75 = vpop.f32.mrb[0].mxu0
    %v76 = vpop.f32.mrb[0].mxu0
    %77 = vdwg.mxu0
    %v78 = vand.u32 2147483647, %v73
    %vm79 = vcmask 64512
    %v80 = vsel %vm79, %v78, -inf
    %81 = vmax.xlane.f32.xlu0 %v80
    %v82 = vpop.xlane.xlu0 %81
    %v83 = vrot.slane %v82, 4
    %v84 = vmax.f32 %v82, %v83
    %v85 = vrot.slane %v84, 2
    %v86 = vmax.f32 %v84, %v85
    %v87 = vrot.slane %v86, 1
    %v88 = vmax.f32 %v86, %v87
    %s89 = vtos %v88
    %s90 = sadd.f32 %s89, 1e-30
    %v91 = vstv %s90
    %v92 = vrcp.pop %v91
    %v93 = vmul.f32 %v73, %v92
    %v94 = vmul.f32 %v93, %v93
    %v95 = vsel %vm79, %v94, 0.0
    %96 = vadd.xlane.f32.xlu0 %v95
    %v97 = vpop.xlane.xlu0 %96
    %v98 = vrot.slane %v97, 4
    %v99 = vadd.f32 %v97, %v98
    %v100 = vrot.slane %v99, 2
    %v101 = vadd.f32 %v99, %v100
    %v102 = vrot.slane %v101, 1
    %v103 = vadd.f32 %v101, %v102
    %s104 = vtos %v103
    %s105 = sadd.f32 %s104, 1e-30
    %v106 = vstv %s105
    %v107 = vrsqrt.pop %v106
    %s108 = vtos %v107
    %v109 = vstv %s108
    %v110 = vmul.f32 %v93, %v109
    %s111 = smul.f32 %s90, %s105
    %s112 = smul.f32 %s111, %s108
    %v113 = vld [vmem:[#allocation5] sm:$0xf]
    %114 = vmatprep.subr.bf16.mxu0 0
    %115 = vmatpush1.bf16.xpose.msra.mxu0 %v113
    %116 = vmatprep.subr.bf16.mxu0 0
    %117 = vmatpush1.bf16.xpose.msra.mxu0 0
    %118 = vmatprep.subr.bf16.mxu0 0
    %119 = vmatpush1.bf16.xpose.msra.mxu0 0
    %120 = vmatprep.subr.bf16.mxu0 0
    %121 = vmatpush1.bf16.xpose.msra.mxu0 0
    %122 = vmatprep.subr.bf16.mxu0 0
    %123 = vmatpush1.bf16.xpose.msra.mxu0 0
    %124 = vmatprep.subr.bf16.mxu0 0
    %125 = vmatpush1.bf16.xpose.msra.mxu0 0
    %126 = vmatprep.subr.bf16.mxu0 0
    %127 = vmatpush1.bf16.xpose.msra.mxu0 0
    %128 = vmatprep.subr.bf16.mxu0 0
    %129 = vmatpush1.bf16.xpose.msra.mxu0 0
    %130 = vmatprep.subr.bf16.mxu0 0
    %131 = vmatpush1.bf16.xpose.msra.mxu0 0
    %132 = vmatprep.subr.bf16.mxu0 0
    %133 = vmatpush1.bf16.xpose.msra.mxu0 0
    %134 = vmatprep.subr.bf16.mxu0 0
    %135 = vmatpush1.bf16.xpose.msra.mxu0 0
    %136 = vmatprep.subr.bf16.mxu0 0
    %137 = vmatpush1.bf16.xpose.msra.mxu0 0
    %138 = vmatprep.subr.bf16.mxu0 0
    %139 = vmatpush1.bf16.xpose.msra.mxu0 0
    %140 = vmatprep.subr.bf16.mxu0 0
    %141 = vmatpush1.bf16.xpose.msra.mxu0 0
    %142 = vmatprep.subr.bf16.mxu0 0
    %143 = vmatpush1.bf16.xpose.msra.mxu0 0
    %144 = vmatprep.subr.bf16.mxu0 0
    %145 = vmatpush1.bf16.xpose.msra.mxu0 0
    %146 = vmatprep.mubr.bf16.mxu0 0
    %147 = vmatmul.mubr.bf16.gmra.mrb[0].mxu0 %v113
    %v148 = vpop.f32.mrb[0].mxu0
    %v149 = vadd.f32 0.0, %v148
    %v150 = vpop.f32.mrb[0].mxu0
    %v151 = vpop.f32.mrb[0].mxu0
    %v152 = vpop.f32.mrb[0].mxu0
    %153 = vdwg.mxu0
    %v154 = vand.u32 2147483647, %v149
    %v155 = vsel %vm79, %v154, -inf
    %156 = vmax.xlane.f32.xlu0 %v155
    %v157 = vpop.xlane.xlu0 %156
    %v158 = vrot.slane %v157, 4
    %v159 = vmax.f32 %v157, %v158
    %v160 = vrot.slane %v159, 2
    %v161 = vmax.f32 %v159, %v160
    %v162 = vrot.slane %v161, 1
    %v163 = vmax.f32 %v161, %v162
    %s164 = vtos %v163
    %s165 = sadd.f32 %s164, 1e-30
    %v166 = vstv %s165
    %v167 = vrcp.pop %v166
    %v168 = vmul.f32 %v149, %v167
    %v169 = vmul.f32 %v168, %v168
    %v170 = vsel %vm79, %v169, 0.0
    %171 = vadd.xlane.f32.xlu0 %v170
    %v172 = vpop.xlane.xlu0 %171
    %v173 = vrot.slane %v172, 4
    %v174 = vadd.f32 %v172, %v173
    %v175 = vrot.slane %v174, 2
    %v176 = vadd.f32 %v174, %v175
    %v177 = vrot.slane %v176, 1
    %v178 = vadd.f32 %v176, %v177
    %s179 = vtos %v178
    %s180 = sadd.f32 %s179, 1e-30
    %v181 = vstv %s180
    %v182 = vrsqrt.pop %v181
    %s183 = vtos %v182
    %v184 = vstv %s183
    %v185 = vmul.f32 %v168, %v184
    %s186 = smul.f32 %s165, %s180
    %s187 = smul.f32 %s186, %s183
    %v189 = vsel %vm79, %v110, 0
    %191 = vmatprep.subr.mxu0 0.0
    %192 = vmatpush1.msra.mxu0 %v110
    %193 = vmatprep.subr.mxu0 0.0
    %194 = vmatpush1.msra.mxu0 0.0
    %195 = vmatprep.subr.mxu0 0.0
    %196 = vmatpush1.msra.mxu0 0.0
    %197 = vmatprep.subr.mxu0 0.0
    %198 = vmatpush1.msra.mxu0 0.0
    %199 = vmatprep.subr.mxu0 0.0
    %200 = vmatpush1.msra.mxu0 0.0
    %201 = vmatprep.subr.mxu0 0.0
    %202 = vmatpush1.msra.mxu0 0.0
    %203 = vmatprep.subr.mxu0 0.0
    %204 = vmatpush1.msra.mxu0 0.0
    %205 = vmatprep.subr.mxu0 0.0
    %206 = vmatpush1.msra.mxu0 0.0
    %207 = vmatprep.subr.mxu0 0.0
    %208 = vmatpush1.msra.mxu0 0.0
    %209 = vmatprep.subr.mxu0 0.0
    %210 = vmatpush1.msra.mxu0 0.0
    %211 = vmatprep.subr.mxu0 0.0
    %212 = vmatpush1.msra.mxu0 0.0
    %213 = vmatprep.subr.mxu0 0.0
    %214 = vmatpush1.msra.mxu0 0.0
    %215 = vmatprep.subr.mxu0 0.0
    %216 = vmatpush1.msra.mxu0 0.0
    %217 = vmatprep.subr.mxu0 0.0
    %218 = vmatpush1.msra.mxu0 0.0
    %219 = vmatprep.subr.mxu0 0.0
    %220 = vmatpush1.msra.mxu0 0.0
    %221 = vmatprep.subr.mxu0 0.0
    %222 = vmatpush1.msra.mxu0 0.0
    %223 = vmatprep.subr.mxu0 0.0
    %224 = vmatpush1.msra.mxu0 0.0
    %225 = vmatprep.subr.mxu0 0.0
    %226 = vmatpush1.msra.mxu0 0.0
    %227 = vmatprep.subr.mxu0 0.0
    %228 = vmatpush1.msra.mxu0 0.0
    %229 = vmatprep.subr.mxu0 0.0
    %230 = vmatpush1.msra.mxu0 0.0
    %231 = vmatprep.subr.mxu0 0.0
    %232 = vmatpush1.msra.mxu0 0.0
    %233 = vmatprep.subr.mxu0 0.0
    %234 = vmatpush1.msra.mxu0 0.0
    %235 = vmatprep.subr.mxu0 0.0
    %236 = vmatpush1.msra.mxu0 0.0
    %237 = vmatprep.subr.mxu0 0.0
    %238 = vmatpush1.msra.mxu0 0.0
    %239 = vmatprep.subr.mxu0 0.0
    %240 = vmatpush1.msra.mxu0 0.0
    %241 = vmatprep.subr.mxu0 0.0
    %242 = vmatpush1.msra.mxu0 0.0
    %243 = vmatprep.subr.mxu0 0.0
    %244 = vmatpush1.msra.mxu0 0.0
    %245 = vmatprep.subr.mxu0 0.0
    %246 = vmatpush1.msra.mxu0 0.0
    %247 = vmatprep.subr.mxu0 0.0
    %248 = vmatpush1.msra.mxu0 0.0
    %249 = vmatprep.subr.mxu0 0.0
    %250 = vmatpush1.msra.mxu0 0.0
    %251 = vmatprep.subr.mxu0 0.0
    %252 = vmatpush1.msra.mxu0 0.0
    %253 = vmatprep.subr.mxu0 0.0
    %254 = vmatpush1.msra.mxu0 0.0
    %255 = vmatprep.mubr.f32.mxu0 0.0
    %256 = vmatmul.mubr.f32.gmra.mrb[0].mxu0 %v189
    %v257 = vpop.f32.mrb[0].mxu0
    %v258 = vadd.f32 0.0, %v257
    %v259 = vpop.f32.mrb[0].mxu0
    %260 = vdwg.mxu0
    %v262 = vsel %vm79, %v185, 0
    %264 = vmatprep.subr.mxu0 0.0
    %265 = vmatpush1.msra.mxu0 %v185
    %266 = vmatprep.subr.mxu0 0.0
    %267 = vmatpush1.msra.mxu0 0.0
    %268 = vmatprep.subr.mxu0 0.0
    %269 = vmatpush1.msra.mxu0 0.0
    %270 = vmatprep.subr.mxu0 0.0
    %271 = vmatpush1.msra.mxu0 0.0
    %272 = vmatprep.subr.mxu0 0.0
    %273 = vmatpush1.msra.mxu0 0.0
    %274 = vmatprep.subr.mxu0 0.0
    %275 = vmatpush1.msra.mxu0 0.0
    %276 = vmatprep.subr.mxu0 0.0
    %277 = vmatpush1.msra.mxu0 0.0
    %278 = vmatprep.subr.mxu0 0.0
    %279 = vmatpush1.msra.mxu0 0.0
    %280 = vmatprep.subr.mxu0 0.0
    %281 = vmatpush1.msra.mxu0 0.0
    %282 = vmatprep.subr.mxu0 0.0
    %283 = vmatpush1.msra.mxu0 0.0
    %284 = vmatprep.subr.mxu0 0.0
    %285 = vmatpush1.msra.mxu0 0.0
    %286 = vmatprep.subr.mxu0 0.0
    %287 = vmatpush1.msra.mxu0 0.0
    %288 = vmatprep.subr.mxu0 0.0
    %289 = vmatpush1.msra.mxu0 0.0
    %290 = vmatprep.subr.mxu0 0.0
    %291 = vmatpush1.msra.mxu0 0.0
    %292 = vmatprep.subr.mxu0 0.0
    %293 = vmatpush1.msra.mxu0 0.0
    %294 = vmatprep.subr.mxu0 0.0
    %295 = vmatpush1.msra.mxu0 0.0
    %296 = vmatprep.subr.mxu0 0.0
    %297 = vmatpush1.msra.mxu0 0.0
    %298 = vmatprep.subr.mxu0 0.0
    %299 = vmatpush1.msra.mxu0 0.0
    %300 = vmatprep.subr.mxu0 0.0
    %301 = vmatpush1.msra.mxu0 0.0
    %302 = vmatprep.subr.mxu0 0.0
    %303 = vmatpush1.msra.mxu0 0.0
    %304 = vmatprep.subr.mxu0 0.0
    %305 = vmatpush1.msra.mxu0 0.0
    %306 = vmatprep.subr.mxu0 0.0
    %307 = vmatpush1.msra.mxu0 0.0
    %308 = vmatprep.subr.mxu0 0.0
    %309 = vmatpush1.msra.mxu0 0.0
    %310 = vmatprep.subr.mxu0 0.0
    %311 = vmatpush1.msra.mxu0 0.0
    %312 = vmatprep.subr.mxu0 0.0
    %313 = vmatpush1.msra.mxu0 0.0
    %314 = vmatprep.subr.mxu0 0.0
    %315 = vmatpush1.msra.mxu0 0.0
    %316 = vmatprep.subr.mxu0 0.0
    %317 = vmatpush1.msra.mxu0 0.0
    %318 = vmatprep.subr.mxu0 0.0
    %319 = vmatpush1.msra.mxu0 0.0
    %320 = vmatprep.subr.mxu0 0.0
    %321 = vmatpush1.msra.mxu0 0.0
    %322 = vmatprep.subr.mxu0 0.0
    %323 = vmatpush1.msra.mxu0 0.0
    %324 = vmatprep.subr.mxu0 0.0
    %325 = vmatpush1.msra.mxu0 0.0
    %326 = vmatprep.subr.mxu0 0.0
    %327 = vmatpush1.msra.mxu0 0.0
    %328 = vmatprep.mubr.f32.mxu0 0.0
    %329 = vmatmul.mubr.f32.gmra.mrb[0].mxu0 %v262
    %v330 = vpop.f32.mrb[0].mxu0
    %v331 = vadd.f32 0.0, %v330
    %v332 = vpop.f32.mrb[0].mxu0
    %333 = vdwg.mxu0
    %v335 = vsel %vm79, %v258, 0
    %337 = vmatprep.subr.mxu0 0.0
    %338 = vmatpush1.msra.mxu0 %v258
    %339 = vmatprep.subr.mxu0 0.0
    %340 = vmatpush1.msra.mxu0 0.0
    %341 = vmatprep.subr.mxu0 0.0
    %342 = vmatpush1.msra.mxu0 0.0
    %343 = vmatprep.subr.mxu0 0.0
    %344 = vmatpush1.msra.mxu0 0.0
    %345 = vmatprep.subr.mxu0 0.0
    %346 = vmatpush1.msra.mxu0 0.0
    %347 = vmatprep.subr.mxu0 0.0
    %348 = vmatpush1.msra.mxu0 0.0
    %349 = vmatprep.subr.mxu0 0.0
    %350 = vmatpush1.msra.mxu0 0.0
    %351 = vmatprep.subr.mxu0 0.0
    %352 = vmatpush1.msra.mxu0 0.0
    %353 = vmatprep.subr.mxu0 0.0
    %354 = vmatpush1.msra.mxu0 0.0
    %355 = vmatprep.subr.mxu0 0.0
    %356 = vmatpush1.msra.mxu0 0.0
    %357 = vmatprep.subr.mxu0 0.0
    %358 = vmatpush1.msra.mxu0 0.0
    %359 = vmatprep.subr.mxu0 0.0
    %360 = vmatpush1.msra.mxu0 0.0
    %361 = vmatprep.subr.mxu0 0.0
    %362 = vmatpush1.msra.mxu0 0.0
    %363 = vmatprep.subr.mxu0 0.0
    %364 = vmatpush1.msra.mxu0 0.0
    %365 = vmatprep.subr.mxu0 0.0
    %366 = vmatpush1.msra.mxu0 0.0
    %367 = vmatprep.subr.mxu0 0.0
    %368 = vmatpush1.msra.mxu0 0.0
    %369 = vmatprep.subr.mxu0 0.0
    %370 = vmatpush1.msra.mxu0 0.0
    %371 = vmatprep.subr.mxu0 0.0
    %372 = vmatpush1.msra.mxu0 0.0
    %373 = vmatprep.subr.mxu0 0.0
    %374 = vmatpush1.msra.mxu0 0.0
    %375 = vmatprep.subr.mxu0 0.0
    %376 = vmatpush1.msra.mxu0 0.0
    %377 = vmatprep.subr.mxu0 0.0
    %378 = vmatpush1.msra.mxu0 0.0
    %379 = vmatprep.subr.mxu0 0.0
    %380 = vmatpush1.msra.mxu0 0.0
    %381 = vmatprep.subr.mxu0 0.0
    %382 = vmatpush1.msra.mxu0 0.0
    %383 = vmatprep.subr.mxu0 0.0
    %384 = vmatpush1.msra.mxu0 0.0
    %385 = vmatprep.subr.mxu0 0.0
    %386 = vmatpush1.msra.mxu0 0.0
    %387 = vmatprep.subr.mxu0 0.0
    %388 = vmatpush1.msra.mxu0 0.0
    %389 = vmatprep.subr.mxu0 0.0
    %390 = vmatpush1.msra.mxu0 0.0
    %391 = vmatprep.subr.mxu0 0.0
    %392 = vmatpush1.msra.mxu0 0.0
    %393 = vmatprep.subr.mxu0 0.0
    %394 = vmatpush1.msra.mxu0 0.0
    %395 = vmatprep.subr.mxu0 0.0
    %396 = vmatpush1.msra.mxu0 0.0
    %397 = vmatprep.subr.mxu0 0.0
    %398 = vmatpush1.msra.mxu0 0.0
    %399 = vmatprep.subr.mxu0 0.0
    %400 = vmatpush1.msra.mxu0 0.0
    %401 = vmatprep.mubr.f32.mxu0 0.0
    %402 = vmatmul.mubr.f32.gmra.mrb[0].mxu0 %v335
    %v403 = vpop.f32.mrb[0].mxu0
    %v404 = vadd.f32 0.0, %v403
    %v405 = vpop.f32.mrb[0].mxu0
    %406 = vdwg.mxu0
    %v408 = vsel %vm79, %v331, 0
    %410 = vmatprep.subr.mxu0 0.0
    %411 = vmatpush1.msra.mxu0 %v331
    %412 = vmatprep.subr.mxu0 0.0
    %413 = vmatpush1.msra.mxu0 0.0
    %414 = vmatprep.subr.mxu0 0.0
    %415 = vmatpush1.msra.mxu0 0.0
    %416 = vmatprep.subr.mxu0 0.0
    %417 = vmatpush1.msra.mxu0 0.0
    %418 = vmatprep.subr.mxu0 0.0
    %419 = vmatpush1.msra.mxu0 0.0
    %420 = vmatprep.subr.mxu0 0.0
    %421 = vmatpush1.msra.mxu0 0.0
    %422 = vmatprep.subr.mxu0 0.0
    %423 = vmatpush1.msra.mxu0 0.0
    %424 = vmatprep.subr.mxu0 0.0
    %425 = vmatpush1.msra.mxu0 0.0
    %426 = vmatprep.subr.mxu0 0.0
    %427 = vmatpush1.msra.mxu0 0.0
    %428 = vmatprep.subr.mxu0 0.0
    %429 = vmatpush1.msra.mxu0 0.0
    %430 = vmatprep.subr.mxu0 0.0
    %431 = vmatpush1.msra.mxu0 0.0
    %432 = vmatprep.subr.mxu0 0.0
    %433 = vmatpush1.msra.mxu0 0.0
    %434 = vmatprep.subr.mxu0 0.0
    %435 = vmatpush1.msra.mxu0 0.0
    %436 = vmatprep.subr.mxu0 0.0
    %437 = vmatpush1.msra.mxu0 0.0
    %438 = vmatprep.subr.mxu0 0.0
    %439 = vmatpush1.msra.mxu0 0.0
    %440 = vmatprep.subr.mxu0 0.0
    %441 = vmatpush1.msra.mxu0 0.0
    %442 = vmatprep.subr.mxu0 0.0
    %443 = vmatpush1.msra.mxu0 0.0
    %444 = vmatprep.subr.mxu0 0.0
    %445 = vmatpush1.msra.mxu0 0.0
    %446 = vmatprep.subr.mxu0 0.0
    %447 = vmatpush1.msra.mxu0 0.0
    %448 = vmatprep.subr.mxu0 0.0
    %449 = vmatpush1.msra.mxu0 0.0
    %450 = vmatprep.subr.mxu0 0.0
    %451 = vmatpush1.msra.mxu0 0.0
    %452 = vmatprep.subr.mxu0 0.0
    %453 = vmatpush1.msra.mxu0 0.0
    %454 = vmatprep.subr.mxu0 0.0
    %455 = vmatpush1.msra.mxu0 0.0
    %456 = vmatprep.subr.mxu0 0.0
    %457 = vmatpush1.msra.mxu0 0.0
    %458 = vmatprep.subr.mxu0 0.0
    %459 = vmatpush1.msra.mxu0 0.0
    %460 = vmatprep.subr.mxu0 0.0
    %461 = vmatpush1.msra.mxu0 0.0
    %462 = vmatprep.subr.mxu0 0.0
    %463 = vmatpush1.msra.mxu0 0.0
    %464 = vmatprep.subr.mxu0 0.0
    %465 = vmatpush1.msra.mxu0 0.0
    %466 = vmatprep.subr.mxu0 0.0
    %467 = vmatpush1.msra.mxu0 0.0
    %468 = vmatprep.subr.mxu0 0.0
    %469 = vmatpush1.msra.mxu0 0.0
    %470 = vmatprep.subr.mxu0 0.0
    %471 = vmatpush1.msra.mxu0 0.0
    %472 = vmatprep.subr.mxu0 0.0
    %473 = vmatpush1.msra.mxu0 0.0
    %474 = vmatprep.mubr.f32.mxu0 0.0
    %475 = vmatmul.mubr.f32.gmra.mrb[0].mxu0 %v408
    %v476 = vpop.f32.mrb[0].mxu0
    %v477 = vadd.f32 0.0, %v476
    %v478 = vpop.f32.mrb[0].mxu0
    %479 = vdwg.mxu0
    %v480 = vmul.f32 %v404, %v404
    %v481 = vsel %vm79, %v480, 0.0
    %482 = vadd.xlane.f32.xlu0 %v481
    %v483 = vpop.xlane.xlu0 %482
    %v484 = vrot.slane %v483, 4
    %v485 = vadd.f32 %v483, %v484
    %v486 = vrot.slane %v485, 2
    %v487 = vadd.f32 %v485, %v486
    %v488 = vrot.slane %v487, 1
    %v489 = vadd.f32 %v487, %v488
    %s490 = vtos %v489
    %s491 = sadd.f32 %s490, 1e-30
    %v492 = vstv %s491
    %v493 = vrsqrt.pop %v492
    %s494 = vtos %v493
    %v495 = vstv %s494
    %v496 = vmul.f32 %v404, %v495
    %v497 = vmul.f32 %v477, %v477
    %v498 = vsel %vm79, %v497, 0.0
    %499 = vadd.xlane.f32.xlu0 %v498
    %v500 = vpop.xlane.xlu0 %499
    %v501 = vrot.slane %v500, 4
    %v502 = vadd.f32 %v500, %v501
    %v503 = vrot.slane %v502, 2
    %v504 = vadd.f32 %v502, %v503
    %v505 = vrot.slane %v504, 1
    %v506 = vadd.f32 %v504, %v505
    %s507 = vtos %v506
    %s508 = sadd.f32 %s507, 1e-30
    %v509 = vstv %s508
    %v510 = vrsqrt.pop %v509
    %s511 = vtos %v510
    %v512 = vstv %s511
    %v513 = vmul.f32 %v477, %v512
    %v515 = vsel %vm79, %v496, 0
    %517 = vmatprep.subr.mxu0 0.0
    %518 = vmatpush1.msra.mxu0 %v496
    %519 = vmatprep.subr.mxu0 0.0
    %520 = vmatpush1.msra.mxu0 0.0
    %521 = vmatprep.subr.mxu0 0.0
    %522 = vmatpush1.msra.mxu0 0.0
    %523 = vmatprep.subr.mxu0 0.0
    %524 = vmatpush1.msra.mxu0 0.0
    %525 = vmatprep.subr.mxu0 0.0
    %526 = vmatpush1.msra.mxu0 0.0
    %527 = vmatprep.subr.mxu0 0.0
    %528 = vmatpush1.msra.mxu0 0.0
    %529 = vmatprep.subr.mxu0 0.0
    %530 = vmatpush1.msra.mxu0 0.0
    %531 = vmatprep.subr.mxu0 0.0
    %532 = vmatpush1.msra.mxu0 0.0
    %533 = vmatprep.subr.mxu0 0.0
    %534 = vmatpush1.msra.mxu0 0.0
    %535 = vmatprep.subr.mxu0 0.0
    %536 = vmatpush1.msra.mxu0 0.0
    %537 = vmatprep.subr.mxu0 0.0
    %538 = vmatpush1.msra.mxu0 0.0
    %539 = vmatprep.subr.mxu0 0.0
    %540 = vmatpush1.msra.mxu0 0.0
    %541 = vmatprep.subr.mxu0 0.0
    %542 = vmatpush1.msra.mxu0 0.0
    %543 = vmatprep.subr.mxu0 0.0
    %544 = vmatpush1.msra.mxu0 0.0
    %545 = vmatprep.subr.mxu0 0.0
    %546 = vmatpush1.msra.mxu0 0.0
    %547 = vmatprep.subr.mxu0 0.0
    %548 = vmatpush1.msra.mxu0 0.0
    %549 = vmatprep.subr.mxu0 0.0
    %550 = vmatpush1.msra.mxu0 0.0
    %551 = vmatprep.subr.mxu0 0.0
    %552 = vmatpush1.msra.mxu0 0.0
    %553 = vmatprep.subr.mxu0 0.0
    %554 = vmatpush1.msra.mxu0 0.0
    %555 = vmatprep.subr.mxu0 0.0
    %556 = vmatpush1.msra.mxu0 0.0
    %557 = vmatprep.subr.mxu0 0.0
    %558 = vmatpush1.msra.mxu0 0.0
    %559 = vmatprep.subr.mxu0 0.0
    %560 = vmatpush1.msra.mxu0 0.0
    %561 = vmatprep.subr.mxu0 0.0
    %562 = vmatpush1.msra.mxu0 0.0
    %563 = vmatprep.subr.mxu0 0.0
    %564 = vmatpush1.msra.mxu0 0.0
    %565 = vmatprep.subr.mxu0 0.0
    %566 = vmatpush1.msra.mxu0 0.0
    %567 = vmatprep.subr.mxu0 0.0
    %568 = vmatpush1.msra.mxu0 0.0
    %569 = vmatprep.subr.mxu0 0.0
    %570 = vmatpush1.msra.mxu0 0.0
    %571 = vmatprep.subr.mxu0 0.0
    %572 = vmatpush1.msra.mxu0 0.0
    %573 = vmatprep.subr.mxu0 0.0
    %574 = vmatpush1.msra.mxu0 0.0
    %575 = vmatprep.subr.mxu0 0.0
    %576 = vmatpush1.msra.mxu0 0.0
    %577 = vmatprep.subr.mxu0 0.0
    %578 = vmatpush1.msra.mxu0 0.0
    %579 = vmatprep.subr.mxu0 0.0
    %580 = vmatpush1.msra.mxu0 0.0
    %581 = vmatprep.mubr.f32.mxu0 0.0
    %582 = vmatmul.mubr.f32.gmra.mrb[0].mxu0 %v515
    %v583 = vpop.f32.mrb[0].mxu0
    %v584 = vadd.f32 0.0, %v583
    %v585 = vpop.f32.mrb[0].mxu0
    %586 = vdwg.mxu0
    %v588 = vsel %vm79, %v513, 0
    %590 = vmatprep.subr.mxu0 0.0
    %591 = vmatpush1.msra.mxu0 %v513
    %592 = vmatprep.subr.mxu0 0.0
    %593 = vmatpush1.msra.mxu0 0.0
    %594 = vmatprep.subr.mxu0 0.0
    %595 = vmatpush1.msra.mxu0 0.0
    %596 = vmatprep.subr.mxu0 0.0
    %597 = vmatpush1.msra.mxu0 0.0
    %598 = vmatprep.subr.mxu0 0.0
    %599 = vmatpush1.msra.mxu0 0.0
    %600 = vmatprep.subr.mxu0 0.0
    %601 = vmatpush1.msra.mxu0 0.0
    %602 = vmatprep.subr.mxu0 0.0
    %603 = vmatpush1.msra.mxu0 0.0
    %604 = vmatprep.subr.mxu0 0.0
    %605 = vmatpush1.msra.mxu0 0.0
    %606 = vmatprep.subr.mxu0 0.0
    %607 = vmatpush1.msra.mxu0 0.0
    %608 = vmatprep.subr.mxu0 0.0
    %609 = vmatpush1.msra.mxu0 0.0
    %610 = vmatprep.subr.mxu0 0.0
    %611 = vmatpush1.msra.mxu0 0.0
    %612 = vmatprep.subr.mxu0 0.0
    %613 = vmatpush1.msra.mxu0 0.0
    %614 = vmatprep.subr.mxu0 0.0
    %615 = vmatpush1.msra.mxu0 0.0
    %616 = vmatprep.subr.mxu0 0.0
    %617 = vmatpush1.msra.mxu0 0.0
    %618 = vmatprep.subr.mxu0 0.0
    %619 = vmatpush1.msra.mxu0 0.0
    %620 = vmatprep.subr.mxu0 0.0
    %621 = vmatpush1.msra.mxu0 0.0
    %622 = vmatprep.subr.mxu0 0.0
    %623 = vmatpush1.msra.mxu0 0.0
    %624 = vmatprep.subr.mxu0 0.0
    %625 = vmatpush1.msra.mxu0 0.0
    %626 = vmatprep.subr.mxu0 0.0
    %627 = vmatpush1.msra.mxu0 0.0
    %628 = vmatprep.subr.mxu0 0.0
    %629 = vmatpush1.msra.mxu0 0.0
    %630 = vmatprep.subr.mxu0 0.0
    %631 = vmatpush1.msra.mxu0 0.0
    %632 = vmatprep.subr.mxu0 0.0
    %633 = vmatpush1.msra.mxu0 0.0
    %634 = vmatprep.subr.mxu0 0.0
    %635 = vmatpush1.msra.mxu0 0.0
    %636 = vmatprep.subr.mxu0 0.0
    %637 = vmatpush1.msra.mxu0 0.0
    %638 = vmatprep.subr.mxu0 0.0
    %639 = vmatpush1.msra.mxu0 0.0
    %640 = vmatprep.subr.mxu0 0.0
    %641 = vmatpush1.msra.mxu0 0.0
    %642 = vmatprep.subr.mxu0 0.0
    %643 = vmatpush1.msra.mxu0 0.0
    %644 = vmatprep.subr.mxu0 0.0
    %645 = vmatpush1.msra.mxu0 0.0
    %646 = vmatprep.subr.mxu0 0.0
    %647 = vmatpush1.msra.mxu0 0.0
    %648 = vmatprep.subr.mxu0 0.0
    %649 = vmatpush1.msra.mxu0 0.0
    %650 = vmatprep.subr.mxu0 0.0
    %651 = vmatpush1.msra.mxu0 0.0
    %652 = vmatprep.subr.mxu0 0.0
    %653 = vmatpush1.msra.mxu0 0.0
    %654 = vmatprep.mubr.f32.mxu0 0.0
    %655 = vmatmul.mubr.f32.gmra.mrb[0].mxu0 %v588
    %v656 = vpop.f32.mrb[0].mxu0
    %v657 = vadd.f32 0.0, %v656
    %v658 = vpop.f32.mrb[0].mxu0
    %659 = vdwg.mxu0
    %v661 = vsel %vm79, %v584, 0
    %663 = vmatprep.subr.mxu0 0.0
    %664 = vmatpush1.msra.mxu0 %v584
    %665 = vmatprep.subr.mxu0 0.0
    %666 = vmatpush1.msra.mxu0 0.0
    %667 = vmatprep.subr.mxu0 0.0
    %668 = vmatpush1.msra.mxu0 0.0
    %669 = vmatprep.subr.mxu0 0.0
    %670 = vmatpush1.msra.mxu0 0.0
    %671 = vmatprep.subr.mxu0 0.0
    %672 = vmatpush1.msra.mxu0 0.0
    %673 = vmatprep.subr.mxu0 0.0
    %674 = vmatpush1.msra.mxu0 0.0
    %675 = vmatprep.subr.mxu0 0.0
    %676 = vmatpush1.msra.mxu0 0.0
    %677 = vmatprep.subr.mxu0 0.0
    %678 = vmatpush1.msra.mxu0 0.0
    %679 = vmatprep.subr.mxu0 0.0
    %680 = vmatpush1.msra.mxu0 0.0
    %681 = vmatprep.subr.mxu0 0.0
    %682 = vmatpush1.msra.mxu0 0.0
    %683 = vmatprep.subr.mxu0 0.0
    %684 = vmatpush1.msra.mxu0 0.0
    %685 = vmatprep.subr.mxu0 0.0
    %686 = vmatpush1.msra.mxu0 0.0
    %687 = vmatprep.subr.mxu0 0.0
    %688 = vmatpush1.msra.mxu0 0.0
    %689 = vmatprep.subr.mxu0 0.0
    %690 = vmatpush1.msra.mxu0 0.0
    %691 = vmatprep.subr.mxu0 0.0
    %692 = vmatpush1.msra.mxu0 0.0
    %693 = vmatprep.subr.mxu0 0.0
    %694 = vmatpush1.msra.mxu0 0.0
    %695 = vmatprep.subr.mxu0 0.0
    %696 = vmatpush1.msra.mxu0 0.0
    %697 = vmatprep.subr.mxu0 0.0
    %698 = vmatpush1.msra.mxu0 0.0
    %699 = vmatprep.subr.mxu0 0.0
    %700 = vmatpush1.msra.mxu0 0.0
    %701 = vmatprep.subr.mxu0 0.0
    %702 = vmatpush1.msra.mxu0 0.0
    %703 = vmatprep.subr.mxu0 0.0
    %704 = vmatpush1.msra.mxu0 0.0
    %705 = vmatprep.subr.mxu0 0.0
    %706 = vmatpush1.msra.mxu0 0.0
    %707 = vmatprep.subr.mxu0 0.0
    %708 = vmatpush1.msra.mxu0 0.0
    %709 = vmatprep.subr.mxu0 0.0
    %710 = vmatpush1.msra.mxu0 0.0
    %711 = vmatprep.subr.mxu0 0.0
    %712 = vmatpush1.msra.mxu0 0.0
    %713 = vmatprep.subr.mxu0 0.0
    %714 = vmatpush1.msra.mxu0 0.0
    %715 = vmatprep.subr.mxu0 0.0
    %716 = vmatpush1.msra.mxu0 0.0
    %717 = vmatprep.subr.mxu0 0.0
    %718 = vmatpush1.msra.mxu0 0.0
    %719 = vmatprep.subr.mxu0 0.0
    %720 = vmatpush1.msra.mxu0 0.0
    %721 = vmatprep.subr.mxu0 0.0
    %722 = vmatpush1.msra.mxu0 0.0
    %723 = vmatprep.subr.mxu0 0.0
    %724 = vmatpush1.msra.mxu0 0.0
    %725 = vmatprep.subr.mxu0 0.0
    %726 = vmatpush1.msra.mxu0 0.0
    %727 = vmatprep.mubr.f32.mxu0 0.0
    %728 = vmatmul.mubr.f32.gmra.mrb[0].mxu0 %v661
    %v729 = vpop.f32.mrb[0].mxu0
    %v730 = vadd.f32 0.0, %v729
    %v731 = vpop.f32.mrb[0].mxu0
    %732 = vdwg.mxu0
    %v734 = vsel %vm79, %v657, 0
    %736 = vmatprep.subr.mxu0 0.0
    %737 = vmatpush1.msra.mxu0 %v657
    %738 = vmatprep.subr.mxu0 0.0
    %739 = vmatpush1.msra.mxu0 0.0
    %740 = vmatprep.subr.mxu0 0.0
    %741 = vmatpush1.msra.mxu0 0.0
    %742 = vmatprep.subr.mxu0 0.0
    %743 = vmatpush1.msra.mxu0 0.0
    %744 = vmatprep.subr.mxu0 0.0
    %745 = vmatpush1.msra.mxu0 0.0
    %746 = vmatprep.subr.mxu0 0.0
    %747 = vmatpush1.msra.mxu0 0.0
    %748 = vmatprep.subr.mxu0 0.0
    %749 = vmatpush1.msra.mxu0 0.0
    %750 = vmatprep.subr.mxu0 0.0
    %751 = vmatpush1.msra.mxu0 0.0
    %752 = vmatprep.subr.mxu0 0.0
    %753 = vmatpush1.msra.mxu0 0.0
    %754 = vmatprep.subr.mxu0 0.0
    %755 = vmatpush1.msra.mxu0 0.0
    %756 = vmatprep.subr.mxu0 0.0
    %757 = vmatpush1.msra.mxu0 0.0
    %758 = vmatprep.subr.mxu0 0.0
    %759 = vmatpush1.msra.mxu0 0.0
    %760 = vmatprep.subr.mxu0 0.0
    %761 = vmatpush1.msra.mxu0 0.0
    %762 = vmatprep.subr.mxu0 0.0
    %763 = vmatpush1.msra.mxu0 0.0
    %764 = vmatprep.subr.mxu0 0.0
    %765 = vmatpush1.msra.mxu0 0.0
    %766 = vmatprep.subr.mxu0 0.0
    %767 = vmatpush1.msra.mxu0 0.0
    %768 = vmatprep.subr.mxu0 0.0
    %769 = vmatpush1.msra.mxu0 0.0
    %770 = vmatprep.subr.mxu0 0.0
    %771 = vmatpush1.msra.mxu0 0.0
    %772 = vmatprep.subr.mxu0 0.0
    %773 = vmatpush1.msra.mxu0 0.0
    %774 = vmatprep.subr.mxu0 0.0
    %775 = vmatpush1.msra.mxu0 0.0
    %776 = vmatprep.subr.mxu0 0.0
    %777 = vmatpush1.msra.mxu0 0.0
    %778 = vmatprep.subr.mxu0 0.0
    %779 = vmatpush1.msra.mxu0 0.0
    %780 = vmatprep.subr.mxu0 0.0
    %781 = vmatpush1.msra.mxu0 0.0
    %782 = vmatprep.subr.mxu0 0.0
    %783 = vmatpush1.msra.mxu0 0.0
    %784 = vmatprep.subr.mxu0 0.0
    %785 = vmatpush1.msra.mxu0 0.0
    %786 = vmatprep.subr.mxu0 0.0
    %787 = vmatpush1.msra.mxu0 0.0
    %788 = vmatprep.subr.mxu0 0.0
    %789 = vmatpush1.msra.mxu0 0.0
    %790 = vmatprep.subr.mxu0 0.0
    %791 = vmatpush1.msra.mxu0 0.0
    %792 = vmatprep.subr.mxu0 0.0
    %793 = vmatpush1.msra.mxu0 0.0
    %794 = vmatprep.subr.mxu0 0.0
    %795 = vmatpush1.msra.mxu0 0.0
    %796 = vmatprep.subr.mxu0 0.0
    %797 = vmatpush1.msra.mxu0 0.0
    %798 = vmatprep.subr.mxu0 0.0
    %799 = vmatpush1.msra.mxu0 0.0
    %800 = vmatprep.mubr.f32.mxu0 0.0
    %801 = vmatmul.mubr.f32.gmra.mrb[0].mxu0 %v734
    %v802 = vpop.f32.mrb[0].mxu0
    %v803 = vadd.f32 0.0, %v802
    %v804 = vpop.f32.mrb[0].mxu0
    %805 = vdwg.mxu0
    %v806 = vmul.f32 %v730, %v730
    %v807 = vsel %vm79, %v806, 0.0
    %808 = vadd.xlane.f32.xlu0 %v807
    %v809 = vpop.xlane.xlu0 %808
    %v810 = vrot.slane %v809, 4
    %v811 = vadd.f32 %v809, %v810
    %v812 = vrot.slane %v811, 2
    %v813 = vadd.f32 %v811, %v812
    %v814 = vrot.slane %v813, 1
    %v815 = vadd.f32 %v813, %v814
    %s816 = vtos %v815
    %s817 = sadd.f32 %s816, 1e-30
    %v818 = vstv %s817
    %v819 = vrsqrt.pop %v818
    %s820 = vtos %v819
    %v821 = vstv %s820
    %v822 = vmul.f32 %v730, %v821
    %v823 = vmul.f32 %v803, %v803
    %v824 = vsel %vm79, %v823, 0.0
    %825 = vadd.xlane.f32.xlu0 %v824
    %v826 = vpop.xlane.xlu0 %825
    %v827 = vrot.slane %v826, 4
    %v828 = vadd.f32 %v826, %v827
    %v829 = vrot.slane %v828, 2
    %v830 = vadd.f32 %v828, %v829
    %v831 = vrot.slane %v830, 1
    %v832 = vadd.f32 %v830, %v831
    %s833 = vtos %v832
    %s834 = sadd.f32 %s833, 1e-30
    %v835 = vstv %s834
    %v836 = vrsqrt.pop %v835
    %s837 = vtos %v836
    %v838 = vstv %s837
    %v839 = vmul.f32 %v803, %v838
    %v841 = vsel %vm79, %v822, 0
    %843 = vmatprep.subr.mxu0 0.0
    %844 = vmatpush1.msra.mxu0 %v822
    %845 = vmatprep.subr.mxu0 0.0
    %846 = vmatpush1.msra.mxu0 0.0
    %847 = vmatprep.subr.mxu0 0.0
    %848 = vmatpush1.msra.mxu0 0.0
    %849 = vmatprep.subr.mxu0 0.0
    %850 = vmatpush1.msra.mxu0 0.0
    %851 = vmatprep.subr.mxu0 0.0
    %852 = vmatpush1.msra.mxu0 0.0
    %853 = vmatprep.subr.mxu0 0.0
    %854 = vmatpush1.msra.mxu0 0.0
    %855 = vmatprep.subr.mxu0 0.0
    %856 = vmatpush1.msra.mxu0 0.0
    %857 = vmatprep.subr.mxu0 0.0
    %858 = vmatpush1.msra.mxu0 0.0
    %859 = vmatprep.subr.mxu0 0.0
    %860 = vmatpush1.msra.mxu0 0.0
    %861 = vmatprep.subr.mxu0 0.0
    %862 = vmatpush1.msra.mxu0 0.0
    %863 = vmatprep.subr.mxu0 0.0
    %864 = vmatpush1.msra.mxu0 0.0
    %865 = vmatprep.subr.mxu0 0.0
    %866 = vmatpush1.msra.mxu0 0.0
    %867 = vmatprep.subr.mxu0 0.0
    %868 = vmatpush1.msra.mxu0 0.0
    %869 = vmatprep.subr.mxu0 0.0
    %870 = vmatpush1.msra.mxu0 0.0
    %871 = vmatprep.subr.mxu0 0.0
    %872 = vmatpush1.msra.mxu0 0.0
    %873 = vmatprep.subr.mxu0 0.0
    %874 = vmatpush1.msra.mxu0 0.0
    %875 = vmatprep.subr.mxu0 0.0
    %876 = vmatpush1.msra.mxu0 0.0
    %877 = vmatprep.subr.mxu0 0.0
    %878 = vmatpush1.msra.mxu0 0.0
    %879 = vmatprep.subr.mxu0 0.0
    %880 = vmatpush1.msra.mxu0 0.0
    %881 = vmatprep.subr.mxu0 0.0
    %882 = vmatpush1.msra.mxu0 0.0
    %883 = vmatprep.subr.mxu0 0.0
    %884 = vmatpush1.msra.mxu0 0.0
    %885 = vmatprep.subr.mxu0 0.0
    %886 = vmatpush1.msra.mxu0 0.0
    %887 = vmatprep.subr.mxu0 0.0
    %888 = vmatpush1.msra.mxu0 0.0
    %889 = vmatprep.subr.mxu0 0.0
    %890 = vmatpush1.msra.mxu0 0.0
    %891 = vmatprep.subr.mxu0 0.0
    %892 = vmatpush1.msra.mxu0 0.0
    %893 = vmatprep.subr.mxu0 0.0
    %894 = vmatpush1.msra.mxu0 0.0
    %895 = vmatprep.subr.mxu0 0.0
    %896 = vmatpush1.msra.mxu0 0.0
    %897 = vmatprep.subr.mxu0 0.0
    %898 = vmatpush1.msra.mxu0 0.0
    %899 = vmatprep.subr.mxu0 0.0
    %900 = vmatpush1.msra.mxu0 0.0
    %901 = vmatprep.subr.mxu0 0.0
    %902 = vmatpush1.msra.mxu0 0.0
    %903 = vmatprep.subr.mxu0 0.0
    %904 = vmatpush1.msra.mxu0 0.0
    %905 = vmatprep.subr.mxu0 0.0
    %906 = vmatpush1.msra.mxu0 0.0
    %907 = vmatprep.mubr.f32.mxu0 0.0
    %908 = vmatmul.mubr.f32.gmra.mrb[0].mxu0 %v841
    %v909 = vpop.f32.mrb[0].mxu0
    %v910 = vadd.f32 0.0, %v909
    %v911 = vpop.f32.mrb[0].mxu0
    %912 = vdwg.mxu0
    %v914 = vsel %vm79, %v839, 0
    %916 = vmatprep.subr.mxu0 0.0
    %917 = vmatpush1.msra.mxu0 %v839
    %918 = vmatprep.subr.mxu0 0.0
    %919 = vmatpush1.msra.mxu0 0.0
    %920 = vmatprep.subr.mxu0 0.0
    %921 = vmatpush1.msra.mxu0 0.0
    %922 = vmatprep.subr.mxu0 0.0
    %923 = vmatpush1.msra.mxu0 0.0
    %924 = vmatprep.subr.mxu0 0.0
    %925 = vmatpush1.msra.mxu0 0.0
    %926 = vmatprep.subr.mxu0 0.0
    %927 = vmatpush1.msra.mxu0 0.0
    %928 = vmatprep.subr.mxu0 0.0
    %929 = vmatpush1.msra.mxu0 0.0
    %930 = vmatprep.subr.mxu0 0.0
    %931 = vmatpush1.msra.mxu0 0.0
    %932 = vmatprep.subr.mxu0 0.0
    %933 = vmatpush1.msra.mxu0 0.0
    %934 = vmatprep.subr.mxu0 0.0
    %935 = vmatpush1.msra.mxu0 0.0
    %936 = vmatprep.subr.mxu0 0.0
    %937 = vmatpush1.msra.mxu0 0.0
    %938 = vmatprep.subr.mxu0 0.0
    %939 = vmatpush1.msra.mxu0 0.0
    %940 = vmatprep.subr.mxu0 0.0
    %941 = vmatpush1.msra.mxu0 0.0
    %942 = vmatprep.subr.mxu0 0.0
    %943 = vmatpush1.msra.mxu0 0.0
    %944 = vmatprep.subr.mxu0 0.0
    %945 = vmatpush1.msra.mxu0 0.0
    %946 = vmatprep.subr.mxu0 0.0
    %947 = vmatpush1.msra.mxu0 0.0
    %948 = vmatprep.subr.mxu0 0.0
    %949 = vmatpush1.msra.mxu0 0.0
    %950 = vmatprep.subr.mxu0 0.0
    %951 = vmatpush1.msra.mxu0 0.0
    %952 = vmatprep.subr.mxu0 0.0
    %953 = vmatpush1.msra.mxu0 0.0
    %954 = vmatprep.subr.mxu0 0.0
    %955 = vmatpush1.msra.mxu0 0.0
    %956 = vmatprep.subr.mxu0 0.0
    %957 = vmatpush1.msra.mxu0 0.0
    %958 = vmatprep.subr.mxu0 0.0
    %959 = vmatpush1.msra.mxu0 0.0
    %960 = vmatprep.subr.mxu0 0.0
    %961 = vmatpush1.msra.mxu0 0.0
    %962 = vmatprep.subr.mxu0 0.0
    %963 = vmatpush1.msra.mxu0 0.0
    %964 = vmatprep.subr.mxu0 0.0
    %965 = vmatpush1.msra.mxu0 0.0
    %966 = vmatprep.subr.mxu0 0.0
    %967 = vmatpush1.msra.mxu0 0.0
    %968 = vmatprep.subr.mxu0 0.0
    %969 = vmatpush1.msra.mxu0 0.0
    %970 = vmatprep.subr.mxu0 0.0
    %971 = vmatpush1.msra.mxu0 0.0
    %972 = vmatprep.subr.mxu0 0.0
    %973 = vmatpush1.msra.mxu0 0.0
    %974 = vmatprep.subr.mxu0 0.0
    %975 = vmatpush1.msra.mxu0 0.0
    %976 = vmatprep.subr.mxu0 0.0
    %977 = vmatpush1.msra.mxu0 0.0
    %978 = vmatprep.subr.mxu0 0.0
    %979 = vmatpush1.msra.mxu0 0.0
    %980 = vmatprep.mubr.f32.mxu0 0.0
    %981 = vmatmul.mubr.f32.gmra.mrb[0].mxu0 %v914
    %v982 = vpop.f32.mrb[0].mxu0
    %v983 = vadd.f32 0.0, %v982
    %v984 = vpop.f32.mrb[0].mxu0
    %985 = vdwg.mxu0
    %v987 = vsel %vm79, %v910, 0
    %989 = vmatprep.subr.mxu0 0.0
    %990 = vmatpush1.msra.mxu0 %v910
    %991 = vmatprep.subr.mxu0 0.0
    %992 = vmatpush1.msra.mxu0 0.0
    %993 = vmatprep.subr.mxu0 0.0
    %994 = vmatpush1.msra.mxu0 0.0
    %995 = vmatprep.subr.mxu0 0.0
    %996 = vmatpush1.msra.mxu0 0.0
    %997 = vmatprep.subr.mxu0 0.0
    %998 = vmatpush1.msra.mxu0 0.0
    %999 = vmatprep.subr.mxu0 0.0
    %1000 = vmatpush1.msra.mxu0 0.0
    %1001 = vmatprep.subr.mxu0 0.0
    %1002 = vmatpush1.msra.mxu0 0.0
    %1003 = vmatprep.subr.mxu0 0.0
    %1004 = vmatpush1.msra.mxu0 0.0
    %1005 = vmatprep.subr.mxu0 0.0
    %1006 = vmatpush1.msra.mxu0 0.0
    %1007 = vmatprep.subr.mxu0 0.0
    %1008 = vmatpush1.msra.mxu0 0.0
    %1009 = vmatprep.subr.mxu0 0.0
    %1010 = vmatpush1.msra.mxu0 0.0
    %1011 = vmatprep.subr.mxu0 0.0
    %1012 = vmatpush1.msra.mxu0 0.0
    %1013 = vmatprep.subr.mxu0 0.0
    %1014 = vmatpush1.msra.mxu0 0.0
    %1015 = vmatprep.subr.mxu0 0.0
    %1016 = vmatpush1.msra.mxu0 0.0
    %1017 = vmatprep.subr.mxu0 0.0
    %1018 = vmatpush1.msra.mxu0 0.0
    %1019 = vmatprep.subr.mxu0 0.0
    %1020 = vmatpush1.msra.mxu0 0.0
    %1021 = vmatprep.subr.mxu0 0.0
    %1022 = vmatpush1.msra.mxu0 0.0
    %1023 = vmatprep.subr.mxu0 0.0
    %1024 = vmatpush1.msra.mxu0 0.0
    %1025 = vmatprep.subr.mxu0 0.0
    %1026 = vmatpush1.msra.mxu0 0.0
    %1027 = vmatprep.subr.mxu0 0.0
    %1028 = vmatpush1.msra.mxu0 0.0
    %1029 = vmatprep.subr.mxu0 0.0
    %1030 = vmatpush1.msra.mxu0 0.0
    %1031 = vmatprep.subr.mxu0 0.0
    %1032 = vmatpush1.msra.mxu0 0.0
    %1033 = vmatprep.subr.mxu0 0.0
    %1034 = vmatpush1.msra.mxu0 0.0
    %1035 = vmatprep.subr.mxu0 0.0
    %1036 = vmatpush1.msra.mxu0 0.0
    %1037 = vmatprep.subr.mxu0 0.0
    %1038 = vmatpush1.msra.mxu0 0.0
    %1039 = vmatprep.subr.mxu0 0.0
    %1040 = vmatpush1.msra.mxu0 0.0
    %1041 = vmatprep.subr.mxu0 0.0
    %1042 = vmatpush1.msra.mxu0 0.0
    %1043 = vmatprep.subr.mxu0 0.0
    %1044 = vmatpush1.msra.mxu0 0.0
    %1045 = vmatprep.subr.mxu0 0.0
    %1046 = vmatpush1.msra.mxu0 0.0
    %1047 = vmatprep.subr.mxu0 0.0
    %1048 = vmatpush1.msra.mxu0 0.0
    %1049 = vmatprep.subr.mxu0 0.0
    %1050 = vmatpush1.msra.mxu0 0.0
    %1051 = vmatprep.subr.mxu0 0.0
    %1052 = vmatpush1.msra.mxu0 0.0
    %1053 = vmatprep.mubr.f32.mxu0 0.0
    %1054 = vmatmul.mubr.f32.gmra.mrb[0].mxu0 %v987
    %v1055 = vpop.f32.mrb[0].mxu0
    %v1056 = vadd.f32 0.0, %v1055
    %v1057 = vpop.f32.mrb[0].mxu0
    %1058 = vdwg.mxu0
    %v1060 = vsel %vm79, %v983, 0
    %1062 = vmatprep.subr.mxu0 0.0
    %1063 = vmatpush1.msra.mxu0 %v983
    %1064 = vmatprep.subr.mxu0 0.0
    %1065 = vmatpush1.msra.mxu0 0.0
    %1066 = vmatprep.subr.mxu0 0.0
    %1067 = vmatpush1.msra.mxu0 0.0
    %1068 = vmatprep.subr.mxu0 0.0
    %1069 = vmatpush1.msra.mxu0 0.0
    %1070 = vmatprep.subr.mxu0 0.0
    %1071 = vmatpush1.msra.mxu0 0.0
    %1072 = vmatprep.subr.mxu0 0.0
    %1073 = vmatpush1.msra.mxu0 0.0
    %1074 = vmatprep.subr.mxu0 0.0
    %1075 = vmatpush1.msra.mxu0 0.0
    %1076 = vmatprep.subr.mxu0 0.0
    %1077 = vmatpush1.msra.mxu0 0.0
    %1078 = vmatprep.subr.mxu0 0.0
    %1079 = vmatpush1.msra.mxu0 0.0
    %1080 = vmatprep.subr.mxu0 0.0
    %1081 = vmatpush1.msra.mxu0 0.0
    %1082 = vmatprep.subr.mxu0 0.0
    %1083 = vmatpush1.msra.mxu0 0.0
    %1084 = vmatprep.subr.mxu0 0.0
    %1085 = vmatpush1.msra.mxu0 0.0
    %1086 = vmatprep.subr.mxu0 0.0
    %1087 = vmatpush1.msra.mxu0 0.0
    %1088 = vmatprep.subr.mxu0 0.0
    %1089 = vmatpush1.msra.mxu0 0.0
    %1090 = vmatprep.subr.mxu0 0.0
    %1091 = vmatpush1.msra.mxu0 0.0
    %1092 = vmatprep.subr.mxu0 0.0
    %1093 = vmatpush1.msra.mxu0 0.0
    %1094 = vmatprep.subr.mxu0 0.0
    %1095 = vmatpush1.msra.mxu0 0.0
    %1096 = vmatprep.subr.mxu0 0.0
    %1097 = vmatpush1.msra.mxu0 0.0
    %1098 = vmatprep.subr.mxu0 0.0
    %1099 = vmatpush1.msra.mxu0 0.0
    %1100 = vmatprep.subr.mxu0 0.0
    %1101 = vmatpush1.msra.mxu0 0.0
    %1102 = vmatprep.subr.mxu0 0.0
    %1103 = vmatpush1.msra.mxu0 0.0
    %1104 = vmatprep.subr.mxu0 0.0
    %1105 = vmatpush1.msra.mxu0 0.0
    %1106 = vmatprep.subr.mxu0 0.0
    %1107 = vmatpush1.msra.mxu0 0.0
    %1108 = vmatprep.subr.mxu0 0.0
    %1109 = vmatpush1.msra.mxu0 0.0
    %1110 = vmatprep.subr.mxu0 0.0
    %1111 = vmatpush1.msra.mxu0 0.0
    %1112 = vmatprep.subr.mxu0 0.0
    %1113 = vmatpush1.msra.mxu0 0.0
    %1114 = vmatprep.subr.mxu0 0.0
    %1115 = vmatpush1.msra.mxu0 0.0
    %1116 = vmatprep.subr.mxu0 0.0
    %1117 = vmatpush1.msra.mxu0 0.0
    %1118 = vmatprep.subr.mxu0 0.0
    %1119 = vmatpush1.msra.mxu0 0.0
    %1120 = vmatprep.subr.mxu0 0.0
    %1121 = vmatpush1.msra.mxu0 0.0
    %1122 = vmatprep.subr.mxu0 0.0
    %1123 = vmatpush1.msra.mxu0 0.0
    %1124 = vmatprep.subr.mxu0 0.0
    %1125 = vmatpush1.msra.mxu0 0.0
    %1126 = vmatprep.mubr.f32.mxu0 0.0
    %1127 = vmatmul.mubr.f32.gmra.mrb[0].mxu0 %v1060
    %v1128 = vpop.f32.mrb[0].mxu0
    %v1129 = vadd.f32 0.0, %v1128
    %v1130 = vpop.f32.mrb[0].mxu0
    %1131 = vdwg.mxu0
    %v1132 = vmul.f32 %v1056, %v1056
    %v1133 = vsel %vm79, %v1132, 0.0
    %1134 = vadd.xlane.f32.xlu0 %v1133
    %v1135 = vpop.xlane.xlu0 %1134
    %v1136 = vrot.slane %v1135, 4
    %v1137 = vadd.f32 %v1135, %v1136
    %v1138 = vrot.slane %v1137, 2
    %v1139 = vadd.f32 %v1137, %v1138
    %v1140 = vrot.slane %v1139, 1
    %v1141 = vadd.f32 %v1139, %v1140
    %s1142 = vtos %v1141
    %s1143 = sadd.f32 %s1142, 1e-30
    %v1144 = vstv %s1143
    %v1145 = vrsqrt.pop %v1144
    %s1146 = vtos %v1145
    %v1147 = vstv %s1146
    %v1148 = vmul.f32 %v1056, %v1147
    %v1149 = vmul.f32 %v1129, %v1129
    %v1150 = vsel %vm79, %v1149, 0.0
    %1151 = vadd.xlane.f32.xlu0 %v1150
    %v1152 = vpop.xlane.xlu0 %1151
    %v1153 = vrot.slane %v1152, 4
    %v1154 = vadd.f32 %v1152, %v1153
    %v1155 = vrot.slane %v1154, 2
    %v1156 = vadd.f32 %v1154, %v1155
    %v1157 = vrot.slane %v1156, 1
    %v1158 = vadd.f32 %v1156, %v1157
    %s1159 = vtos %v1158
    %s1160 = sadd.f32 %s1159, 1e-30
    %v1161 = vstv %s1160
    %v1162 = vrsqrt.pop %v1161
    %s1163 = vtos %v1162
    %v1164 = vstv %s1163
    %v1165 = vmul.f32 %v1129, %v1164
    %v1167 = vsel %vm79, %v1148, 0
    %1169 = vmatprep.subr.mxu0 0.0
    %1170 = vmatpush1.msra.mxu0 %v1148
    %1171 = vmatprep.subr.mxu0 0.0
    %1172 = vmatpush1.msra.mxu0 0.0
    %1173 = vmatprep.subr.mxu0 0.0
    %1174 = vmatpush1.msra.mxu0 0.0
    %1175 = vmatprep.subr.mxu0 0.0
    %1176 = vmatpush1.msra.mxu0 0.0
    %1177 = vmatprep.subr.mxu0 0.0
    %1178 = vmatpush1.msra.mxu0 0.0
    %1179 = vmatprep.subr.mxu0 0.0
    %1180 = vmatpush1.msra.mxu0 0.0
    %1181 = vmatprep.subr.mxu0 0.0
    %1182 = vmatpush1.msra.mxu0 0.0
    %1183 = vmatprep.subr.mxu0 0.0
    %1184 = vmatpush1.msra.mxu0 0.0
    %1185 = vmatprep.subr.mxu0 0.0
    %1186 = vmatpush1.msra.mxu0 0.0
    %1187 = vmatprep.subr.mxu0 0.0
    %1188 = vmatpush1.msra.mxu0 0.0
    %1189 = vmatprep.subr.mxu0 0.0
    %1190 = vmatpush1.msra.mxu0 0.0
    %1191 = vmatprep.subr.mxu0 0.0
    %1192 = vmatpush1.msra.mxu0 0.0
    %1193 = vmatprep.subr.mxu0 0.0
    %1194 = vmatpush1.msra.mxu0 0.0
    %1195 = vmatprep.subr.mxu0 0.0
    %1196 = vmatpush1.msra.mxu0 0.0
    %1197 = vmatprep.subr.mxu0 0.0
    %1198 = vmatpush1.msra.mxu0 0.0
    %1199 = vmatprep.subr.mxu0 0.0
    %1200 = vmatpush1.msra.mxu0 0.0
    %1201 = vmatprep.subr.mxu0 0.0
    %1202 = vmatpush1.msra.mxu0 0.0
    %1203 = vmatprep.subr.mxu0 0.0
    %1204 = vmatpush1.msra.mxu0 0.0
    %1205 = vmatprep.subr.mxu0 0.0
    %1206 = vmatpush1.msra.mxu0 0.0
    %1207 = vmatprep.subr.mxu0 0.0
    %1208 = vmatpush1.msra.mxu0 0.0
    %1209 = vmatprep.subr.mxu0 0.0
    %1210 = vmatpush1.msra.mxu0 0.0
    %1211 = vmatprep.subr.mxu0 0.0
    %1212 = vmatpush1.msra.mxu0 0.0
    %1213 = vmatprep.subr.mxu0 0.0
    %1214 = vmatpush1.msra.mxu0 0.0
    %1215 = vmatprep.subr.mxu0 0.0
    %1216 = vmatpush1.msra.mxu0 0.0
    %1217 = vmatprep.subr.mxu0 0.0
    %1218 = vmatpush1.msra.mxu0 0.0
    %1219 = vmatprep.subr.mxu0 0.0
    %1220 = vmatpush1.msra.mxu0 0.0
    %1221 = vmatprep.subr.mxu0 0.0
    %1222 = vmatpush1.msra.mxu0 0.0
    %1223 = vmatprep.subr.mxu0 0.0
    %1224 = vmatpush1.msra.mxu0 0.0
    %1225 = vmatprep.subr.mxu0 0.0
    %1226 = vmatpush1.msra.mxu0 0.0
    %1227 = vmatprep.subr.mxu0 0.0
    %1228 = vmatpush1.msra.mxu0 0.0
    %1229 = vmatprep.subr.mxu0 0.0
    %1230 = vmatpush1.msra.mxu0 0.0
    %1231 = vmatprep.subr.mxu0 0.0
    %1232 = vmatpush1.msra.mxu0 0.0
    %1233 = vmatprep.mubr.f32.mxu0 0.0
    %1234 = vmatmul.mubr.f32.gmra.mrb[0].mxu0 %v1167
    %v1235 = vpop.f32.mrb[0].mxu0
    %v1236 = vadd.f32 0.0, %v1235
    %v1237 = vpop.f32.mrb[0].mxu0
    %1238 = vdwg.mxu0
    %v1240 = vsel %vm79, %v1165, 0
    %1242 = vmatprep.subr.mxu0 0.0
    %1243 = vmatpush1.msra.mxu0 %v1165
    %1244 = vmatprep.subr.mxu0 0.0
    %1245 = vmatpush1.msra.mxu0 0.0
    %1246 = vmatprep.subr.mxu0 0.0
    %1247 = vmatpush1.msra.mxu0 0.0
    %1248 = vmatprep.subr.mxu0 0.0
    %1249 = vmatpush1.msra.mxu0 0.0
    %1250 = vmatprep.subr.mxu0 0.0
    %1251 = vmatpush1.msra.mxu0 0.0
    %1252 = vmatprep.subr.mxu0 0.0
    %1253 = vmatpush1.msra.mxu0 0.0
    %1254 = vmatprep.subr.mxu0 0.0
    %1255 = vmatpush1.msra.mxu0 0.0
    %1256 = vmatprep.subr.mxu0 0.0
    %1257 = vmatpush1.msra.mxu0 0.0
    %1258 = vmatprep.subr.mxu0 0.0
    %1259 = vmatpush1.msra.mxu0 0.0
    %1260 = vmatprep.subr.mxu0 0.0
    %1261 = vmatpush1.msra.mxu0 0.0
    %1262 = vmatprep.subr.mxu0 0.0
    %1263 = vmatpush1.msra.mxu0 0.0
    %1264 = vmatprep.subr.mxu0 0.0
    %1265 = vmatpush1.msra.mxu0 0.0
    %1266 = vmatprep.subr.mxu0 0.0
    %1267 = vmatpush1.msra.mxu0 0.0
    %1268 = vmatprep.subr.mxu0 0.0
    %1269 = vmatpush1.msra.mxu0 0.0
    %1270 = vmatprep.subr.mxu0 0.0
    %1271 = vmatpush1.msra.mxu0 0.0
    %1272 = vmatprep.subr.mxu0 0.0
    %1273 = vmatpush1.msra.mxu0 0.0
    %1274 = vmatprep.subr.mxu0 0.0
    %1275 = vmatpush1.msra.mxu0 0.0
    %1276 = vmatprep.subr.mxu0 0.0
    %1277 = vmatpush1.msra.mxu0 0.0
    %1278 = vmatprep.subr.mxu0 0.0
    %1279 = vmatpush1.msra.mxu0 0.0
    %1280 = vmatprep.subr.mxu0 0.0
    %1281 = vmatpush1.msra.mxu0 0.0
    %1282 = vmatprep.subr.mxu0 0.0
    %1283 = vmatpush1.msra.mxu0 0.0
    %1284 = vmatprep.subr.mxu0 0.0
    %1285 = vmatpush1.msra.mxu0 0.0
    %1286 = vmatprep.subr.mxu0 0.0
    %1287 = vmatpush1.msra.mxu0 0.0
    %1288 = vmatprep.subr.mxu0 0.0
    %1289 = vmatpush1.msra.mxu0 0.0
    %1290 = vmatprep.subr.mxu0 0.0
    %1291 = vmatpush1.msra.mxu0 0.0
    %1292 = vmatprep.subr.mxu0 0.0
    %1293 = vmatpush1.msra.mxu0 0.0
    %1294 = vmatprep.subr.mxu0 0.0
    %1295 = vmatpush1.msra.mxu0 0.0
    %1296 = vmatprep.subr.mxu0 0.0
    %1297 = vmatpush1.msra.mxu0 0.0
    %1298 = vmatprep.subr.mxu0 0.0
    %1299 = vmatpush1.msra.mxu0 0.0
    %1300 = vmatprep.subr.mxu0 0.0
    %1301 = vmatpush1.msra.mxu0 0.0
    %1302 = vmatprep.subr.mxu0 0.0
    %1303 = vmatpush1.msra.mxu0 0.0
    %1304 = vmatprep.subr.mxu0 0.0
    %1305 = vmatpush1.msra.mxu0 0.0
    %1306 = vmatprep.mubr.f32.mxu0 0.0
    %1307 = vmatmul.mubr.f32.gmra.mrb[0].mxu0 %v1240
    %v1308 = vpop.f32.mrb[0].mxu0
    %v1309 = vadd.f32 0.0, %v1308
    %v1310 = vpop.f32.mrb[0].mxu0
    %1311 = vdwg.mxu0
    %v1313 = vsel %vm79, %v1236, 0
    %1315 = vmatprep.subr.mxu0 0.0
    %1316 = vmatpush1.msra.mxu0 %v1236
    %1317 = vmatprep.subr.mxu0 0.0
    %1318 = vmatpush1.msra.mxu0 0.0
    %1319 = vmatprep.subr.mxu0 0.0
    %1320 = vmatpush1.msra.mxu0 0.0
    %1321 = vmatprep.subr.mxu0 0.0
    %1322 = vmatpush1.msra.mxu0 0.0
    %1323 = vmatprep.subr.mxu0 0.0
    %1324 = vmatpush1.msra.mxu0 0.0
    %1325 = vmatprep.subr.mxu0 0.0
    %1326 = vmatpush1.msra.mxu0 0.0
    %1327 = vmatprep.subr.mxu0 0.0
    %1328 = vmatpush1.msra.mxu0 0.0
    %1329 = vmatprep.subr.mxu0 0.0
    %1330 = vmatpush1.msra.mxu0 0.0
    %1331 = vmatprep.subr.mxu0 0.0
    %1332 = vmatpush1.msra.mxu0 0.0
    %1333 = vmatprep.subr.mxu0 0.0
    %1334 = vmatpush1.msra.mxu0 0.0
    %1335 = vmatprep.subr.mxu0 0.0
    %1336 = vmatpush1.msra.mxu0 0.0
    %1337 = vmatprep.subr.mxu0 0.0
    %1338 = vmatpush1.msra.mxu0 0.0
    %1339 = vmatprep.subr.mxu0 0.0
    %1340 = vmatpush1.msra.mxu0 0.0
    %1341 = vmatprep.subr.mxu0 0.0
    %1342 = vmatpush1.msra.mxu0 0.0
    %1343 = vmatprep.subr.mxu0 0.0
    %1344 = vmatpush1.msra.mxu0 0.0
    %1345 = vmatprep.subr.mxu0 0.0
    %1346 = vmatpush1.msra.mxu0 0.0
    %1347 = vmatprep.subr.mxu0 0.0
    %1348 = vmatpush1.msra.mxu0 0.0
    %1349 = vmatprep.subr.mxu0 0.0
    %1350 = vmatpush1.msra.mxu0 0.0
    %1351 = vmatprep.subr.mxu0 0.0
    %1352 = vmatpush1.msra.mxu0 0.0
    %1353 = vmatprep.subr.mxu0 0.0
    %1354 = vmatpush1.msra.mxu0 0.0
    %1355 = vmatprep.subr.mxu0 0.0
    %1356 = vmatpush1.msra.mxu0 0.0
    %1357 = vmatprep.subr.mxu0 0.0
    %1358 = vmatpush1.msra.mxu0 0.0
    %1359 = vmatprep.subr.mxu0 0.0
    %1360 = vmatpush1.msra.mxu0 0.0
    %1361 = vmatprep.subr.mxu0 0.0
    %1362 = vmatpush1.msra.mxu0 0.0
    %1363 = vmatprep.subr.mxu0 0.0
    %1364 = vmatpush1.msra.mxu0 0.0
    %1365 = vmatprep.subr.mxu0 0.0
    %1366 = vmatpush1.msra.mxu0 0.0
    %1367 = vmatprep.subr.mxu0 0.0
    %1368 = vmatpush1.msra.mxu0 0.0
    %1369 = vmatprep.subr.mxu0 0.0
    %1370 = vmatpush1.msra.mxu0 0.0
    %1371 = vmatprep.subr.mxu0 0.0
    %1372 = vmatpush1.msra.mxu0 0.0
    %1373 = vmatprep.subr.mxu0 0.0
    %1374 = vmatpush1.msra.mxu0 0.0
    %1375 = vmatprep.subr.mxu0 0.0
    %1376 = vmatpush1.msra.mxu0 0.0
    %1377 = vmatprep.subr.mxu0 0.0
    %1378 = vmatpush1.msra.mxu0 0.0
    %1379 = vmatprep.mubr.f32.mxu0 0.0
    %1380 = vmatmul.mubr.f32.gmra.mrb[0].mxu0 %v1313
    %v1381 = vpop.f32.mrb[0].mxu0
    %v1382 = vadd.f32 0.0, %v1381
    %v1383 = vpop.f32.mrb[0].mxu0
    %1384 = vdwg.mxu0
    %v1386 = vsel %vm79, %v1309, 0
    %1388 = vmatprep.subr.mxu0 0.0
    %1389 = vmatpush1.msra.mxu0 %v1309
    %1390 = vmatprep.subr.mxu0 0.0
    %1391 = vmatpush1.msra.mxu0 0.0
    %1392 = vmatprep.subr.mxu0 0.0
    %1393 = vmatpush1.msra.mxu0 0.0
    %1394 = vmatprep.subr.mxu0 0.0
    %1395 = vmatpush1.msra.mxu0 0.0
    %1396 = vmatprep.subr.mxu0 0.0
    %1397 = vmatpush1.msra.mxu0 0.0
    %1398 = vmatprep.subr.mxu0 0.0
    %1399 = vmatpush1.msra.mxu0 0.0
    %1400 = vmatprep.subr.mxu0 0.0
    %1401 = vmatpush1.msra.mxu0 0.0
    %1402 = vmatprep.subr.mxu0 0.0
    %1403 = vmatpush1.msra.mxu0 0.0
    %1404 = vmatprep.subr.mxu0 0.0
    %1405 = vmatpush1.msra.mxu0 0.0
    %1406 = vmatprep.subr.mxu0 0.0
    %1407 = vmatpush1.msra.mxu0 0.0
    %1408 = vmatprep.subr.mxu0 0.0
    %1409 = vmatpush1.msra.mxu0 0.0
    %1410 = vmatprep.subr.mxu0 0.0
    %1411 = vmatpush1.msra.mxu0 0.0
    %1412 = vmatprep.subr.mxu0 0.0
    %1413 = vmatpush1.msra.mxu0 0.0
    %1414 = vmatprep.subr.mxu0 0.0
    %1415 = vmatpush1.msra.mxu0 0.0
    %1416 = vmatprep.subr.mxu0 0.0
    %1417 = vmatpush1.msra.mxu0 0.0
    %1418 = vmatprep.subr.mxu0 0.0
    %1419 = vmatpush1.msra.mxu0 0.0
    %1420 = vmatprep.subr.mxu0 0.0
    %1421 = vmatpush1.msra.mxu0 0.0
    %1422 = vmatprep.subr.mxu0 0.0
    %1423 = vmatpush1.msra.mxu0 0.0
    %1424 = vmatprep.subr.mxu0 0.0
    %1425 = vmatpush1.msra.mxu0 0.0
    %1426 = vmatprep.subr.mxu0 0.0
    %1427 = vmatpush1.msra.mxu0 0.0
    %1428 = vmatprep.subr.mxu0 0.0
    %1429 = vmatpush1.msra.mxu0 0.0
    %1430 = vmatprep.subr.mxu0 0.0
    %1431 = vmatpush1.msra.mxu0 0.0
    %1432 = vmatprep.subr.mxu0 0.0
    %1433 = vmatpush1.msra.mxu0 0.0
    %1434 = vmatprep.subr.mxu0 0.0
    %1435 = vmatpush1.msra.mxu0 0.0
    %1436 = vmatprep.subr.mxu0 0.0
    %1437 = vmatpush1.msra.mxu0 0.0
    %1438 = vmatprep.subr.mxu0 0.0
    %1439 = vmatpush1.msra.mxu0 0.0
    %1440 = vmatprep.subr.mxu0 0.0
    %1441 = vmatpush1.msra.mxu0 0.0
    %1442 = vmatprep.subr.mxu0 0.0
    %1443 = vmatpush1.msra.mxu0 0.0
    %1444 = vmatprep.subr.mxu0 0.0
    %1445 = vmatpush1.msra.mxu0 0.0
    %1446 = vmatprep.subr.mxu0 0.0
    %1447 = vmatpush1.msra.mxu0 0.0
    %1448 = vmatprep.subr.mxu0 0.0
    %1449 = vmatpush1.msra.mxu0 0.0
    %1450 = vmatprep.subr.mxu0 0.0
    %1451 = vmatpush1.msra.mxu0 0.0
    %1452 = vmatprep.mubr.f32.mxu0 0.0
    %1453 = vmatmul.mubr.f32.gmra.mrb[0].mxu0 %v1386
    %v1454 = vpop.f32.mrb[0].mxu0
    %v1455 = vadd.f32 0.0, %v1454
    %v1456 = vpop.f32.mrb[0].mxu0
    %1457 = vdwg.mxu0
    %v1458 = vmul.f32 %v1382, %v1382
    %v1459 = vsel %vm79, %v1458, 0.0
    %1460 = vadd.xlane.f32.xlu0 %v1459
    %v1461 = vpop.xlane.xlu0 %1460
    %v1462 = vrot.slane %v1461, 4
    %v1463 = vadd.f32 %v1461, %v1462
    %v1464 = vrot.slane %v1463, 2
    %v1465 = vadd.f32 %v1463, %v1464
    %v1466 = vrot.slane %v1465, 1
    %v1467 = vadd.f32 %v1465, %v1466
    %s1468 = vtos %v1467
    %s1469 = sadd.f32 %s1468, 1e-30
    %v1470 = vstv %s1469
    %v1471 = vrsqrt.pop %v1470
    %s1472 = vtos %v1471
    %v1473 = vstv %s1472
    %v1474 = vmul.f32 %v1382, %v1473
    %v1475 = vmul.f32 %v1455, %v1455
    %v1476 = vsel %vm79, %v1475, 0.0
    %1477 = vadd.xlane.f32.xlu0 %v1476
    %v1478 = vpop.xlane.xlu0 %1477
    %v1479 = vrot.slane %v1478, 4
    %v1480 = vadd.f32 %v1478, %v1479
    %v1481 = vrot.slane %v1480, 2
    %v1482 = vadd.f32 %v1480, %v1481
    %v1483 = vrot.slane %v1482, 1
    %v1484 = vadd.f32 %v1482, %v1483
    %s1485 = vtos %v1484
    %s1486 = sadd.f32 %s1485, 1e-30
    %v1487 = vstv %s1486
    %v1488 = vrsqrt.pop %v1487
    %s1489 = vtos %v1488
    %v1490 = vstv %s1489
    %v1491 = vmul.f32 %v1455, %v1490
    %v1493 = vsel %vm79, %v1474, 0
    %1495 = vmatprep.subr.mxu0 0.0
    %1496 = vmatpush1.msra.mxu0 %v1474
    %1497 = vmatprep.subr.mxu0 0.0
    %1498 = vmatpush1.msra.mxu0 0.0
    %1499 = vmatprep.subr.mxu0 0.0
    %1500 = vmatpush1.msra.mxu0 0.0
    %1501 = vmatprep.subr.mxu0 0.0
    %1502 = vmatpush1.msra.mxu0 0.0
    %1503 = vmatprep.subr.mxu0 0.0
    %1504 = vmatpush1.msra.mxu0 0.0
    %1505 = vmatprep.subr.mxu0 0.0
    %1506 = vmatpush1.msra.mxu0 0.0
    %1507 = vmatprep.subr.mxu0 0.0
    %1508 = vmatpush1.msra.mxu0 0.0
    %1509 = vmatprep.subr.mxu0 0.0
    %1510 = vmatpush1.msra.mxu0 0.0
    %1511 = vmatprep.subr.mxu0 0.0
    %1512 = vmatpush1.msra.mxu0 0.0
    %1513 = vmatprep.subr.mxu0 0.0
    %1514 = vmatpush1.msra.mxu0 0.0
    %1515 = vmatprep.subr.mxu0 0.0
    %1516 = vmatpush1.msra.mxu0 0.0
    %1517 = vmatprep.subr.mxu0 0.0
    %1518 = vmatpush1.msra.mxu0 0.0
    %1519 = vmatprep.subr.mxu0 0.0
    %1520 = vmatpush1.msra.mxu0 0.0
    %1521 = vmatprep.subr.mxu0 0.0
    %1522 = vmatpush1.msra.mxu0 0.0
    %1523 = vmatprep.subr.mxu0 0.0
    %1524 = vmatpush1.msra.mxu0 0.0
    %1525 = vmatprep.subr.mxu0 0.0
    %1526 = vmatpush1.msra.mxu0 0.0
    %1527 = vmatprep.subr.mxu0 0.0
    %1528 = vmatpush1.msra.mxu0 0.0
    %1529 = vmatprep.subr.mxu0 0.0
    %1530 = vmatpush1.msra.mxu0 0.0
    %1531 = vmatprep.subr.mxu0 0.0
    %1532 = vmatpush1.msra.mxu0 0.0
    %1533 = vmatprep.subr.mxu0 0.0
    %1534 = vmatpush1.msra.mxu0 0.0
    %1535 = vmatprep.subr.mxu0 0.0
    %1536 = vmatpush1.msra.mxu0 0.0
    %1537 = vmatprep.subr.mxu0 0.0
    %1538 = vmatpush1.msra.mxu0 0.0
    %1539 = vmatprep.subr.mxu0 0.0
    %1540 = vmatpush1.msra.mxu0 0.0
    %1541 = vmatprep.subr.mxu0 0.0
    %1542 = vmatpush1.msra.mxu0 0.0
    %1543 = vmatprep.subr.mxu0 0.0
    %1544 = vmatpush1.msra.mxu0 0.0
    %1545 = vmatprep.subr.mxu0 0.0
    %1546 = vmatpush1.msra.mxu0 0.0
    %1547 = vmatprep.subr.mxu0 0.0
    %1548 = vmatpush1.msra.mxu0 0.0
    %1549 = vmatprep.subr.mxu0 0.0
    %1550 = vmatpush1.msra.mxu0 0.0
    %1551 = vmatprep.subr.mxu0 0.0
    %1552 = vmatpush1.msra.mxu0 0.0
    %1553 = vmatprep.subr.mxu0 0.0
    %1554 = vmatpush1.msra.mxu0 0.0
    %1555 = vmatprep.subr.mxu0 0.0
    %1556 = vmatpush1.msra.mxu0 0.0
    %1557 = vmatprep.subr.mxu0 0.0
    %1558 = vmatpush1.msra.mxu0 0.0
    %1559 = vmatprep.mubr.f32.mxu0 0.0
    %1560 = vmatmul.mubr.f32.gmra.mrb[0].mxu0 %v1493
    %v1561 = vpop.f32.mrb[0].mxu0
    %v1562 = vadd.f32 0.0, %v1561
    %v1563 = vpop.f32.mrb[0].mxu0
    %1564 = vdwg.mxu0
    %v1566 = vsel %vm79, %v1491, 0
    %1568 = vmatprep.subr.mxu0 0.0
    %1569 = vmatpush1.msra.mxu0 %v1491
    %1570 = vmatprep.subr.mxu0 0.0
    %1571 = vmatpush1.msra.mxu0 0.0
    %1572 = vmatprep.subr.mxu0 0.0
    %1573 = vmatpush1.msra.mxu0 0.0
    %1574 = vmatprep.subr.mxu0 0.0
    %1575 = vmatpush1.msra.mxu0 0.0
    %1576 = vmatprep.subr.mxu0 0.0
    %1577 = vmatpush1.msra.mxu0 0.0
    %1578 = vmatprep.subr.mxu0 0.0
    %1579 = vmatpush1.msra.mxu0 0.0
    %1580 = vmatprep.subr.mxu0 0.0
    %1581 = vmatpush1.msra.mxu0 0.0
    %1582 = vmatprep.subr.mxu0 0.0
    %1583 = vmatpush1.msra.mxu0 0.0
    %1584 = vmatprep.subr.mxu0 0.0
    %1585 = vmatpush1.msra.mxu0 0.0
    %1586 = vmatprep.subr.mxu0 0.0
    %1587 = vmatpush1.msra.mxu0 0.0
    %1588 = vmatprep.subr.mxu0 0.0
    %1589 = vmatpush1.msra.mxu0 0.0
    %1590 = vmatprep.subr.mxu0 0.0
    %1591 = vmatpush1.msra.mxu0 0.0
    %1592 = vmatprep.subr.mxu0 0.0
    %1593 = vmatpush1.msra.mxu0 0.0
    %1594 = vmatprep.subr.mxu0 0.0
    %1595 = vmatpush1.msra.mxu0 0.0
    %1596 = vmatprep.subr.mxu0 0.0
    %1597 = vmatpush1.msra.mxu0 0.0
    %1598 = vmatprep.subr.mxu0 0.0
    %1599 = vmatpush1.msra.mxu0 0.0
    %1600 = vmatprep.subr.mxu0 0.0
    %1601 = vmatpush1.msra.mxu0 0.0
    %1602 = vmatprep.subr.mxu0 0.0
    %1603 = vmatpush1.msra.mxu0 0.0
    %1604 = vmatprep.subr.mxu0 0.0
    %1605 = vmatpush1.msra.mxu0 0.0
    %1606 = vmatprep.subr.mxu0 0.0
    %1607 = vmatpush1.msra.mxu0 0.0
    %1608 = vmatprep.subr.mxu0 0.0
    %1609 = vmatpush1.msra.mxu0 0.0
    %1610 = vmatprep.subr.mxu0 0.0
    %1611 = vmatpush1.msra.mxu0 0.0
    %1612 = vmatprep.subr.mxu0 0.0
    %1613 = vmatpush1.msra.mxu0 0.0
    %1614 = vmatprep.subr.mxu0 0.0
    %1615 = vmatpush1.msra.mxu0 0.0
    %1616 = vmatprep.subr.mxu0 0.0
    %1617 = vmatpush1.msra.mxu0 0.0
    %1618 = vmatprep.subr.mxu0 0.0
    %1619 = vmatpush1.msra.mxu0 0.0
    %1620 = vmatprep.subr.mxu0 0.0
    %1621 = vmatpush1.msra.mxu0 0.0
    %1622 = vmatprep.subr.mxu0 0.0
    %1623 = vmatpush1.msra.mxu0 0.0
    %1624 = vmatprep.subr.mxu0 0.0
    %1625 = vmatpush1.msra.mxu0 0.0
    %1626 = vmatprep.subr.mxu0 0.0
    %1627 = vmatpush1.msra.mxu0 0.0
    %1628 = vmatprep.subr.mxu0 0.0
    %1629 = vmatpush1.msra.mxu0 0.0
    %1630 = vmatprep.subr.mxu0 0.0
    %1631 = vmatpush1.msra.mxu0 0.0
    %1632 = vmatprep.mubr.f32.mxu0 0.0
    %1633 = vmatmul.mubr.f32.gmra.mrb[0].mxu0 %v1566
    %v1634 = vpop.f32.mrb[0].mxu0
    %v1635 = vadd.f32 0.0, %v1634
    %v1636 = vpop.f32.mrb[0].mxu0
    %1637 = vdwg.mxu0
    %v1638 = vlaneseq
    %v1639 = vshrl.u32 %v1638, 7
    %v1640 = vlaneseq
    %v1641 = vand.u32 %v1640, 127
    %vm1642 = vcmp.eq.s32.totalorder %v1639, %v1641
    %v1643 = vsel %vm1642, 1, 0
    %v1644 = vcvt.s32.f32 %v1643
    %v1645 = vmul.f32 %v110, %v1562
    %v1646 = vsel %vm79, %v1645, 0.0
    %1647 = vadd.xlane.f32.xlu0 %v1646
    %v1648 = vpop.xlane.xlu0 %1647
    %v1649 = vrot.slane %v1648, 4
    %v1650 = vadd.f32 %v1648, %v1649
    %v1651 = vrot.slane %v1650, 2
    %v1652 = vadd.f32 %v1650, %v1651
    %v1653 = vrot.slane %v1652, 1
    %v1654 = vadd.f32 %v1652, %v1653
    %s1655 = vtos %v1654
    %v1656 = vmul.f32 %v1562, %v1644
    %v1657 = vsel %vm79, %v1656, 0.0
    %1658 = vadd.xlane.f32.xlu0 %v1657
    %v1659 = vpop.xlane.xlu0 %1658
    %v1660 = vrot.slane %v1659, 4
    %v1661 = vadd.f32 %v1659, %v1660
    %v1662 = vrot.slane %v1661, 2
    %v1663 = vadd.f32 %v1661, %v1662
    %v1664 = vrot.slane %v1663, 1
    %v1665 = vadd.f32 %v1663, %v1664
    %s1666 = vtos %v1665
    %s1667 = sadd.f32 %s1666, 1e-30
    %v1668 = vstv %s1667
    %v1669 = vrcp.pop %v1668
    %s1670 = vtos %v1669
    %s1671 = smul.f32 %s1655, %s1670
    %v1672 = vmul.f32 %v185, %v1635
    %v1673 = vsel %vm79, %v1672, 0.0
    %1674 = vadd.xlane.f32.xlu0 %v1673
    %v1675 = vpop.xlane.xlu0 %1674
    %v1676 = vrot.slane %v1675, 4
    %v1677 = vadd.f32 %v1675, %v1676
    %v1678 = vrot.slane %v1677, 2
    %v1679 = vadd.f32 %v1677, %v1678
    %v1680 = vrot.slane %v1679, 1
    %v1681 = vadd.f32 %v1679, %v1680
    %s1682 = vtos %v1681
    %v1683 = vmul.f32 %v1635, %v1644
    %v1684 = vsel %vm79, %v1683, 0.0
    %1685 = vadd.xlane.f32.xlu0 %v1684
    %v1686 = vpop.xlane.xlu0 %1685
    %v1687 = vrot.slane %v1686, 4
    %v1688 = vadd.f32 %v1686, %v1687
    %v1689 = vrot.slane %v1688, 2
    %v1690 = vadd.f32 %v1688, %v1689
    %v1691 = vrot.slane %v1690, 1
    %v1692 = vadd.f32 %v1690, %v1691
    %s1693 = vtos %v1692
    %s1694 = sadd.f32 %s1693, 1e-30
    %v1695 = vstv %s1694
    %v1696 = vrcp.pop %v1695
    %s1697 = vtos %v1696
    %s1698 = smul.f32 %s1682, %s1697
    %s1699 = smul.f32 %s1671, %s112
    %s1700 = smul.f32 %s1698, %s187
    %s1701 = sadd.f32 %s1699, %s1700
    %s1702 = scalar_lea.smem [#allocation7], 0
    %1703 = sst [smem:[%s1702]] %s1701
    // Predicated region
    $region18: #{tpu_custom_call.1} parent=1 // pred_check
      _
    $region19: #{tpu_custom_call.1} parent=1 // pred_check_branch
      %1705 = sbr.rel (0) target = $region21
    $region20: #{tpu_custom_call.1} parent=1 // pred_region
      %s1707 = ssub.s32 16, 16
      %1708 = vsyncadd [#allocation4], %s1707
      %1711 = dma.smem_to_hbm [#allocation7], 16, %s2, [#allocation4]
    $region21: #{tpu_custom_call.1} parent=1 // pred_fallthru
      _
    // Predicated region
    $region22: #{tpu_custom_call.1} parent=1 // pred_check
      _
    $region23: #{tpu_custom_call.1} parent=1 // pred_check_branch
      %1713 = sbr.rel (0) target = $region25
    $region24: #{tpu_custom_call.1} parent=1 // pred_region
      %1714 = dma.done [#allocation4], 16
    $region25: #{tpu_custom_call.1} parent=1 // pred_fallthru
      _
    %1715 = sfence
    %1716 = vsyncpa [#allocation3], 1
    %1717 = vsyncpa [#allocation6], 1
    %1718 = vsyncpa [#allocation4], 1

</llo_original>
